<compile_context>
chip_gen: v7x
topology: tpu7x:2x2x1
jax: 0.10.0
libtpu: 0.0.40
codegen_flags: <defaults>
</compile_context>

<pallas_src>
import jax
import jax.numpy as jnp
from jax.experimental import pallas as pl
from jax.experimental.pallas import tpu as pltpu


def _embed_concat_linear_kernel(x_ref, emb_ref, wt_ref, b_ref, pix_ref, reg_ref):
    # x_ref:   (C_in, T)      tile of x[b] in channel-major layout (no wrapper transpose)
    # emb_ref: (R, C_in)      gathered register embeddings            (VMEM-resident)
    # wt_ref:  (C_in, C_out)  Linear weight, pre-transposed            (VMEM-resident)
    # b_ref:   (1, C_out)     Linear bias                              (VMEM-resident)
    # pix_ref: (T, C_out)     output rows for this pixel tile
    # reg_ref: (R, C_out)     output rows for the register tokens (written once per batch)
    y = jax.lax.dot_general(
        x_ref[...], wt_ref[...],
        dimension_numbers=(((0,), (0,)), ((), ())),   # == x_tile.T @ W.T (transpose fused into MXU op)
        preferred_element_type=jnp.float32)
    pix_ref[...] = (y + b_ref[...]).astype(pix_ref.dtype)

    # Register rows do not depend on the row tile -> compute once per batch;
    # their output block is resident across the (arbitrary) row-tile axis.
    @pl.when(pl.program_id(1) == 0)
    def _():
        r = jnp.dot(emb_ref[...], wt_ref[...], preferred_element_type=jnp.float32)
        reg_ref[...] = (r + b_ref[...]).astype(reg_ref.dtype)


def _embed_concat_identity_kernel(x_ref, emb_ref, pix_ref, reg_ref):
    # Identity-Linear path (embedding_dim_in == embedding_dim_out): pure layout.
    pix_ref[...] = x_ref[...].T.astype(pix_ref.dtype)

    @pl.when(pl.program_id(1) == 0)
    def _():
        reg_ref[...] = emb_ref[...].astype(reg_ref.dtype)


def _pick_row_tile(hw, target=512):
    # Largest lane-friendly tile (multiple of 128) that divides HW; otherwise the
    # full axis (a full-extent block is always a legal BlockSpec).
    for t in (512, 256, 128):
        if t <= target and t <= hw and hw % t == 0:
            return t
    return hw


def embedding_layer_forward(x, emb_table, w=None, b=None, y=None, *, row_tile_target=512):
    """
    x:         (B, C_in, H, W) float32 (NCHW, as in the PyTorch module)
    emb_table: (num_registers, C_in)   nn.Embedding weight
    w, b:      Linear weight (C_out, C_in) / bias (C_out,), or None when
               embedding_dim_in == embedding_dim_out (identity Linear)
    y:         optional 1-D int indices into emb_table; defaults to arange()
               (== the module's `num_register` buffer)
    returns:   (B, R + H*W, C_out)
    """
    B, C_in, H, W = x.shape
    HW = H * W

    idx = jnp.arange(emb_table.shape[0], dtype=jnp.int32) if y is None else y.astype(jnp.int32)
    emb = jnp.take(emb_table, idx, axis=0)            # (R, C_in) -- tiny gather
    R = emb.shape[0]

    x_cm = x.reshape(B, C_in, HW)                     # free reshape; transpose fused in-kernel
    T = _pick_row_tile(HW, row_tile_target)
    grid = (B, HW // T)

    cparams = pltpu.CompilerParams(
        dimension_semantics=("parallel", "arbitrary"),
        vmem_limit_bytes=32 * 1024 * 1024,            # conservative: fits v7x as well as v5e/v6e
    )

    if w is not None:
        C_out = w.shape[0]
        wt = w.T                                      # (C_in, C_out)
        b2 = b.reshape(1, C_out).astype(jnp.float32)
        pix, reg = pl.pallas_call(
            _embed_concat_linear_kernel,
            grid=grid,
            in_specs=[
                pl.BlockSpec((None, C_in, T), lambda bi, j: (bi, 0, j)),   # streamed x tiles
                pl.BlockSpec((R, C_in), lambda bi, j: (0, 0)),             # resident
                pl.BlockSpec((C_in, C_out), lambda bi, j: (0, 0)),         # resident
                pl.BlockSpec((1, C_out), lambda bi, j: (0, 0)),            # resident
            ],
            out_specs=(
                pl.BlockSpec((None, T, C_out), lambda bi, j: (bi, j, 0)),
                pl.BlockSpec((None, R, C_out), lambda bi, j: (bi, 0, 0)),  # resident across j
            ),
            out_shape=(
                jax.ShapeDtypeStruct((B, HW, C_out), jnp.float32),
                jax.ShapeDtypeStruct((B, R, C_out), jnp.float32),
            ),
            compiler_params=cparams,
        )(x_cm, emb, wt, b2)
    else:
        C_out = C_in
        pix, reg = pl.pallas_call(
            _embed_concat_identity_kernel,
            grid=grid,
            in_specs=[
                pl.BlockSpec((None, C_in, T), lambda bi, j: (bi, 0, j)),
                pl.BlockSpec((R, C_in), lambda bi, j: (0, 0)),
            ],
            out_specs=(
                pl.BlockSpec((None, T, C_out), lambda bi, j: (bi, j, 0)),
                pl.BlockSpec((None, R, C_out), lambda bi, j: (bi, 0, 0)),
            ),
            out_shape=(
                jax.ShapeDtypeStruct((B, HW, C_out), jnp.float32),
                jax.ShapeDtypeStruct((B, R, C_out), jnp.float32),
            ),
            compiler_params=cparams,
        )(x_cm, emb)

    # TODO(synk): writing pixel rows directly at sequence offset R inside the kernel
    # (to drop this concat's extra HBM pass) needs unaligned-offset output blocks /
    # manual DMA; kept as a wrapper concat for robustness.
    return jnp.concatenate([reg, pix], axis=1)


def reference_forward(x, emb_table, w=None, b=None, y=None):
    """Pure-JAX reference of the same forward (sanity check)."""
    B, C, H, W = x.shape
    xt = jnp.transpose(x.reshape(B, C, H * W), (0, 2, 1))            # (B, HW, C)
    idx = jnp.arange(emb_table.shape[0], dtype=jnp.int32) if y is None else y.astype(jnp.int32)
    emb = jnp.take(emb_table, idx, axis=0)                           # (R, C)
    cat = jnp.concatenate(
        [jnp.broadcast_to(emb[None], (B,) + emb.shape), xt], axis=1)  # (B, R+HW, C)
    if w is None:
        return cat
    return cat @ w.T + b


if __name__ == "__main__":
    key = jax.random.PRNGKey(0)
    kx, ke, kw, kb, kx2 = jax.random.split(key, 5)

    fwd = jax.jit(embedding_layer_forward)

    # --- Case 1: embedding_dim_in != embedding_dim_out -> real Linear (MXU path) ---
    B, C_in, C_out, H, W, R = 2, 128, 256, 32, 32, 8
    x = jax.random.normal(kx, (B, C_in, H, W), dtype=jnp.float32)
    emb_table = jax.random.normal(ke, (R, C_in), dtype=jnp.float32)       # nn.Embedding weight
    w = 0.02 * jax.random.normal(kw, (C_out, C_in), dtype=jnp.float32)    # nn.Linear weight
    b = 0.02 * jax.random.normal(kb, (C_out,), dtype=jnp.float32)         # nn.Linear bias

    out = jax.block_until_ready(fwd(x, emb_table, w, b))
    ref = jax.block_until_ready(reference_forward(x, emb_table, w, b))
    assert out.shape == (B, R + H * W, C_out)
    assert jnp.allclose(out, ref, rtol=5e-3, atol=5e-3), "Linear-path mismatch vs JAX reference"

    # --- Case 2: embedding_dim_in == embedding_dim_out -> identity Linear (module default) ---
    B2, C2, H2, W2, R2 = 2, 128, 16, 16, 1
    x2 = jax.random.normal(kx2, (B2, C2, H2, W2), dtype=jnp.float32)
    emb2 = jax.random.normal(ke, (R2, C2), dtype=jnp.float32)
    out2 = jax.block_until_ready(fwd(x2, emb2, None, None))
    ref2 = jax.block_until_ready(reference_forward(x2, emb2, None, None))
    assert out2.shape == (B2, R2 + H2 * W2, C2)
    assert jnp.allclose(out2, ref2), "identity-path mismatch vs JAX reference"

    print("KERNEL_OK")
</pallas_src>

<mosaic_0001>
module attributes {stable_mosaic.version = 11 : i64} {
  func.func @_embed_concat_linear_kernel(%arg0: i32, %arg1: i32, %arg2: memref<1x128x512xf32, #tpu.memory_space<vmem>>, %arg3: memref<8x128xf32, #tpu.memory_space<vmem>>, %arg4: memref<128x256xf32, #tpu.memory_space<vmem>>, %arg5: memref<1x256xf32, #tpu.memory_space<vmem>>, %arg6: memref<1x512x256xf32, #tpu.memory_space<vmem>>, %arg7: memref<1x8x256xf32, #tpu.memory_space<vmem>>) attributes {dimension_semantics = [#tpu.dimension_semantics<parallel>, #tpu.dimension_semantics<arbitrary>], iteration_bounds = array<i64: 2, 2>, scalar_prefetch = 0 : i64, scratch_operands = 0 : i64, tpu.core_type = #tpu.core_type<tc>, window_params = [{transform_indices = @transform_0, window_bounds = array<i64: 1, 128, 512>}, {pipeline_mode = #tpu.pipeline_mode<synchronous>, transform_indices = @transform_1, window_bounds = array<i64: 8, 128>}, {pipeline_mode = #tpu.pipeline_mode<synchronous>, transform_indices = @transform_2, window_bounds = array<i64: 128, 256>}, {pipeline_mode = #tpu.pipeline_mode<synchronous>, transform_indices = @transform_3, window_bounds = array<i64: 1, 256>}, {transform_indices = @transform_4, window_bounds = array<i64: 1, 512, 256>}, {transform_indices = @transform_5, window_bounds = array<i64: 1, 8, 256>}]} {
    %c0 = arith.constant 0 : index
    %c0_0 = arith.constant 0 : index
    %c0_1 = arith.constant 0 : index
    %0 = vector.load %arg2[%c0, %c0_0, %c0_1] : memref<1x128x512xf32, #tpu.memory_space<vmem>>, vector<1x128x512xf32>
    %1 = vector.shape_cast %0 : vector<1x128x512xf32> to vector<128x512xf32>
    %c0_2 = arith.constant 0 : index
    %c0_3 = arith.constant 0 : index
    %2 = vector.load %arg4[%c0_2, %c0_3] : memref<128x256xf32, #tpu.memory_space<vmem>>, vector<128x256xf32>
    %cst = arith.constant dense<0.000000e+00> : vector<512x256xf32>
    %3 = tpu.matmul %1, %2, %cst {dimension_numbers = #tpu.dot_dimension_numbers<[0], [0], [1], [1], [0, 1, 1, 1], [], []>} : vector<128x512xf32>, vector<128x256xf32>, vector<512x256xf32> -> vector<512x256xf32>
    %c0_4 = arith.constant 0 : index
    %c0_5 = arith.constant 0 : index
    %4 = vector.load %arg5[%c0_4, %c0_5] : memref<1x256xf32, #tpu.memory_space<vmem>>, vector<1x256xf32>
    %5 = vector.broadcast %4 : vector<1x256xf32> to vector<512x256xf32>
    %6 = arith.addf %3, %5 : vector<512x256xf32>
    %c0_6 = arith.constant 0 : index
    %c0_7 = arith.constant 0 : index
    %c0_8 = arith.constant 0 : index
    %7 = vector.load %arg6[%c0_6, %c0_7, %c0_8] : memref<1x512x256xf32, #tpu.memory_space<vmem>>, vector<1x512x256xf32>
    %8 = vector.shape_cast %7 : vector<1x512x256xf32> to vector<512x256xf32>
    %9 = vector.shape_cast %6 : vector<512x256xf32> to vector<1x512x256xf32>
    tpu.vector_store %arg6[%c0_6, %c0_7, %c0_8], %9 {strides = array<i32>} : memref<1x512x256xf32, #tpu.memory_space<vmem>>, vector<1x512x256xf32>,
    %c0_i32 = arith.constant 0 : i32
    %10 = arith.cmpi eq, %arg1, %c0_i32 : i32
    %11 = arith.extui %10 : i1 to i32
    %c0_i32_9 = arith.constant 0 : i32
    %12 = arith.cmpi ne, %11, %c0_i32_9 : i32
    scf.if %12 {
      %c0_10 = arith.constant 0 : index
      %c0_11 = arith.constant 0 : index
      %13 = vector.load %arg3[%c0_10, %c0_11] : memref<8x128xf32, #tpu.memory_space<vmem>>, vector<8x128xf32>
      %c0_12 = arith.constant 0 : index
      %c0_13 = arith.constant 0 : index
      %14 = vector.load %arg4[%c0_12, %c0_13] : memref<128x256xf32, #tpu.memory_space<vmem>>, vector<128x256xf32>
      %cst_14 = arith.constant dense<0.000000e+00> : vector<8x256xf32>
      %15 = tpu.matmul %13, %14, %cst_14 {dimension_numbers = #tpu.dot_dimension_numbers<[1], [0], [0], [1], [0, 0, 1, 1], [], []>} : vector<8x128xf32>, vector<128x256xf32>, vector<8x256xf32> -> vector<8x256xf32>
      %c0_15 = arith.constant 0 : index
      %c0_16 = arith.constant 0 : index
      %16 = vector.load %arg5[%c0_15, %c0_16] : memref<1x256xf32, #tpu.memory_space<vmem>>, vector<1x256xf32>
      %17 = vector.broadcast %16 : vector<1x256xf32> to vector<8x256xf32>
      %18 = arith.addf %15, %17 : vector<8x256xf32>
      %c0_17 = arith.constant 0 : index
      %c0_18 = arith.constant 0 : index
      %c0_19 = arith.constant 0 : index
      %19 = vector.load %arg7[%c0_17, %c0_18, %c0_19] : memref<1x8x256xf32, #tpu.memory_space<vmem>>, vector<1x8x256xf32>
      %20 = vector.shape_cast %19 : vector<1x8x256xf32> to vector<8x256xf32>
      %21 = vector.shape_cast %18 : vector<8x256xf32> to vector<1x8x256xf32>
      tpu.vector_store %arg7[%c0_17, %c0_18, %c0_19], %21 {strides = array<i32>} : memref<1x8x256xf32, #tpu.memory_space<vmem>>, vector<1x8x256xf32>,
    } else {
    }
    return
  }
  func.func @transform_0(%arg0: i32, %arg1: i32) -> (i32, i32, i32) {
    %c0_i32 = arith.constant 0 : i32
    %c0_i32_0 = arith.constant 0 : i32
    return %arg0, %c0_i32, %arg1 : i32, i32, i32
  }
  func.func @transform_1(%arg0: i32, %arg1: i32) -> (i32, i32) {
    %c0_i32 = arith.constant 0 : i32
    %c0_i32_0 = arith.constant 0 : i32
    %c0_i32_1 = arith.constant 0 : i32
    return %c0_i32, %c0_i32_0 : i32, i32
  }
  func.func @transform_2(%arg0: i32, %arg1: i32) -> (i32, i32) {
    %c0_i32 = arith.constant 0 : i32
    %c0_i32_0 = arith.constant 0 : i32
    %c0_i32_1 = arith.constant 0 : i32
    return %c0_i32, %c0_i32_0 : i32, i32
  }
  func.func @transform_3(%arg0: i32, %arg1: i32) -> (i32, i32) {
    %c0_i32 = arith.constant 0 : i32
    %c0_i32_0 = arith.constant 0 : i32
    %c0_i32_1 = arith.constant 0 : i32
    return %c0_i32, %c0_i32_0 : i32, i32
  }
  func.func @transform_4(%arg0: i32, %arg1: i32) -> (i32, i32, i32) {
    %c0_i32 = arith.constant 0 : i32
    %c0_i32_0 = arith.constant 0 : i32
    return %arg0, %arg1, %c0_i32 : i32, i32, i32
  }
  func.func @transform_5(%arg0: i32, %arg1: i32) -> (i32, i32, i32) {
    %c0_i32 = arith.constant 0 : i32
    %c0_i32_0 = arith.constant 0 : i32
    %c0_i32_1 = arith.constant 0 : i32
    return %arg0, %c0_i32, %c0_i32_0 : i32, i32, i32
  }
}

</mosaic_0001>

<llo_original>
// kernel: embedding_layer_forward.1
$region0: #{embedding_layer_forward.1}
  #allocation0 [shape = 'u32[]', space=smem, size = 0x4, offset = 0x4, fixed_abs, tag = 'smem constant byte address 0x4 - core index']
  #allocation1 [shape = 'u32[144,128]{1,0:T(1,128)}', space=vmem, size = 0x12000, scoped, tag = 'internal scratch']
  %s0 = inlined_call_operand.vmem [shape: f32[2,128,1024], index: 0, kind: input, shape index: {}]
  %s1 = inlined_call_operand.vmem [shape: f32[8,128], index: 1, kind: input, shape index: {}]
  %s2 = inlined_call_operand.vmem [shape: f32[128,256], index: 2, kind: input, shape index: {}]
  %s3 = inlined_call_operand.vmem [shape: f32[1,256], index: 3, kind: input, shape index: {}]
  %s4 = inlined_call_operand.vmem [shape: f32[2,1024,256], index: 4, kind: output, shape index: {0}]
  %s5 = inlined_call_operand.vmem [shape: f32[2,8,256], index: 5, kind: output, shape index: {1}]
  %6 = xla_tuple %s4, %s5
  %s7 = sld [smem:[#allocation0]]
  $region84: #{embedding_layer_forward.1} parent=0
    _
  %s9 = ssub.s32 1, %s7
  %s10 = scalar_select 0, %s9, %s7
  $region1: #{embedding_layer_forward.1} parent=0
    #allocation2 [shape = 'u8[524288]{0}', space=vmem, size = 0x80000, scoped, tag = 'input window, operand 0']
    loop: start=0, step=1, limit=6
    $region2: #{embedding_layer_forward.1} parent=1 // loop_pre_header
      _
    $region3: #{embedding_layer_forward.1} parent=1 // loop_header
      %s12 = sphi 0, %s16
      %p13 = scmp.ge.s32.totalorder %s12, 6
      %s19 = sphi 0, %s31
      %s20 = sphi 0, %s27
      %s21 = sphi 0, %s19
      %s22 = sphi 0, %s20
      %s23 = sphi 0, %s21
      %s24 = sphi 0, %s22
      %s36 = sphi 0, %s38
      %s39 = sphi 0, %s36
      %s40 = sphi 0, %s39
      %s56 = sphi 0, %s40
      %s60 = sphi 0, %s60
      %s62 = sphi 0, %s60
      %s63 = sphi 0, %s62
      %s77 = sphi 0, %s63
      %s81 = sphi 0, %s81
      %s83 = sphi 0, %s81
      %s84 = sphi 0, %s83
      %s98 = sphi 0, %s84
      %s102 = sphi 0, %s102
      %s104 = sphi 0, %s102
      %s105 = sphi 0, %s104
      %s119 = sphi 0, %s105
      %s127 = sphi 0, %s129
      %s130 = sphi 0, %s127
      %s131 = sphi 0, %s130
      %s147 = sphi 0, %s131
      %s153 = sphi 0, %s155
      %s156 = sphi 0, %s153
      %s157 = sphi 0, %s156
      %s173 = sphi 0, %s157
    $region4: #{embedding_layer_forward.1} parent=1 // loop_header_branch
      %15 = sbr.rel (%p13) target = $region8
    $region5: #{embedding_layer_forward.1} parent=1 // loop_body
      %s17 = ssub.s32 %s12, 1
      %s18 = ssub.s32 %s12, 2
      %s25 = sadd.s32 1, %s20
      %p26 = scmp.ge.s32.totalorder %s25, 2
      %s27 = scalar_select %p26, 0, %s25
      %s28 = sadd.s32 1, %s19
      %s29 = scalar_select %p26, %s28, %s19
      %p30 = scmp.ge.s32.totalorder %s29, 2
      %s31 = scalar_select %p30, 0, %s29
      %s32 = ssub.s32 %s19, %s31
      %s33 = ssub.s32 %s20, %s27
      %s34 = sor.u32 %s32, %s33
      %p35 = scmp.eq.s32.totalorder %s34, 0
      %s37 = sadd.s32 %s36, 1
      %s38 = scalar_select %p35, %s36, %s37
      %p41 = pneg %p35
      %p42 = scmp.eq.s32.totalorder %s12, 3
      %p43 = por %p41, %p42
      %p44 = scmp.ne.s32.totalorder %s36, %s39
      %p45 = scmp.eq.s32.totalorder %s12, 0
      %p46 = por %p44, %p45
      %p47 = scmp.ne.s32.totalorder %s36, %s39
      %p48 = scmp.eq.s32.totalorder %s17, 3
      %p49 = por %p47, %p48
      %p50 = scmp.ne.s32.totalorder %s39, %s40
      %p51 = scmp.eq.s32.totalorder %s17, 0
      %p52 = por %p50, %p51
      %p53 = scmp.ne.s32.totalorder %s39, %s40
      %p54 = scmp.eq.s32.totalorder %s18, 3
      %p55 = por %p53, %p54
      %p57 = scmp.ne.s32.totalorder %s40, %s56
      %p58 = scmp.eq.s32.totalorder %s18, 0
      %p59 = por %p57, %p58
      %s61 = sadd.s32 %s60, 1
      %p64 = scmp.eq.s32.totalorder %s12, 3
      %p65 = scmp.ne.s32.totalorder %s60, %s62
      %p66 = scmp.eq.s32.totalorder %s12, 0
      %p67 = por %p65, %p66
      %p68 = scmp.ne.s32.totalorder %s60, %s62
      %p69 = scmp.eq.s32.totalorder %s17, 3
      %p70 = por %p68, %p69
      %p71 = scmp.ne.s32.totalorder %s62, %s63
      %p72 = scmp.eq.s32.totalorder %s17, 0
      %p73 = por %p71, %p72
      %p74 = scmp.ne.s32.totalorder %s62, %s63
      %p75 = scmp.eq.s32.totalorder %s18, 3
      %p76 = por %p74, %p75
      %p78 = scmp.ne.s32.totalorder %s63, %s77
      %p79 = scmp.eq.s32.totalorder %s18, 0
      %p80 = por %p78, %p79
      %s82 = sadd.s32 %s81, 1
      %p85 = scmp.eq.s32.totalorder %s12, 3
      %p86 = scmp.ne.s32.totalorder %s81, %s83
      %p87 = scmp.eq.s32.totalorder %s12, 0
      %p88 = por %p86, %p87
      %p89 = scmp.ne.s32.totalorder %s81, %s83
      %p90 = scmp.eq.s32.totalorder %s17, 3
      %p91 = por %p89, %p90
      %p92 = scmp.ne.s32.totalorder %s83, %s84
      %p93 = scmp.eq.s32.totalorder %s17, 0
      %p94 = por %p92, %p93
      %p95 = scmp.ne.s32.totalorder %s83, %s84
      %p96 = scmp.eq.s32.totalorder %s18, 3
      %p97 = por %p95, %p96
      %p99 = scmp.ne.s32.totalorder %s84, %s98
      %p100 = scmp.eq.s32.totalorder %s18, 0
      %p101 = por %p99, %p100
      %s103 = sadd.s32 %s102, 1
      %p106 = scmp.eq.s32.totalorder %s12, 3
      %p107 = scmp.ne.s32.totalorder %s102, %s104
      %p108 = scmp.eq.s32.totalorder %s12, 0
      %p109 = por %p107, %p108
      %p110 = scmp.ne.s32.totalorder %s102, %s104
      %p111 = scmp.eq.s32.totalorder %s17, 3
      %p112 = por %p110, %p111
      %p113 = scmp.ne.s32.totalorder %s104, %s105
      %p114 = scmp.eq.s32.totalorder %s17, 0
      %p115 = por %p113, %p114
      %p116 = scmp.ne.s32.totalorder %s104, %s105
      %p117 = scmp.eq.s32.totalorder %s18, 3
      %p118 = por %p116, %p117
      %p120 = scmp.ne.s32.totalorder %s105, %s119
      %p121 = scmp.eq.s32.totalorder %s18, 0
      %p122 = por %p120, %p121
      %s123 = ssub.s32 %s19, %s31
      %s124 = ssub.s32 %s20, %s27
      %s125 = sor.u32 %s123, %s124
      %p126 = scmp.eq.s32.totalorder %s125, 0
      %s128 = sadd.s32 %s127, 1
      %s129 = scalar_select %p126, %s127, %s128
      %p132 = pneg %p126
      %p133 = scmp.eq.s32.totalorder %s12, 3
      %p134 = por %p132, %p133
      %p135 = scmp.ne.s32.totalorder %s127, %s130
      %p136 = scmp.eq.s32.totalorder %s12, 0
      %p137 = por %p135, %p136
      %p138 = scmp.ne.s32.totalorder %s127, %s130
      %p139 = scmp.eq.s32.totalorder %s17, 3
      %p140 = por %p138, %p139
      %p141 = scmp.ne.s32.totalorder %s130, %s131
      %p142 = scmp.eq.s32.totalorder %s17, 0
      %p143 = por %p141, %p142
      %p144 = scmp.ne.s32.totalorder %s130, %s131
      %p145 = scmp.eq.s32.totalorder %s18, 3
      %p146 = por %p144, %p145
      %p148 = scmp.ne.s32.totalorder %s131, %s147
      %p149 = scmp.eq.s32.totalorder %s18, 0
      %p150 = por %p148, %p149
      %s151 = ssub.s32 %s19, %s31
      %p152 = scmp.eq.s32.totalorder %s151, 0
      %s154 = sadd.s32 %s153, 1
      %s155 = scalar_select %p152, %s153, %s154
      %p158 = pneg %p152
      %p159 = scmp.eq.s32.totalorder %s12, 3
      %p160 = por %p158, %p159
      %p161 = scmp.ne.s32.totalorder %s153, %s156
      %p162 = scmp.eq.s32.totalorder %s12, 0
      %p163 = por %p161, %p162
      %p164 = scmp.ne.s32.totalorder %s153, %s156
      %p165 = scmp.eq.s32.totalorder %s17, 3
      %p166 = por %p164, %p165
      %p167 = scmp.ne.s32.totalorder %s156, %s157
      %p168 = scmp.eq.s32.totalorder %s17, 0
      %p169 = por %p167, %p168
      %p170 = scmp.ne.s32.totalorder %s156, %s157
      %p171 = scmp.eq.s32.totalorder %s18, 3
      %p172 = por %p170, %p171
      %p174 = scmp.ne.s32.totalorder %s157, %s173
      %p175 = scmp.eq.s32.totalorder %s18, 0
      %p176 = por %p174, %p175
      %p177 = scmp.le.s32.totalorder 1, %s12
      %p178 = scmp.lt.s32.totalorder %s12, 5
      %p179 = pnand %p177, %p178
      %p180 = pneg %p179
      // Predicated region
      $region9: #{embedding_layer_forward.1} parent=5 // pred_check
        _
      $region10: #{embedding_layer_forward.1} parent=5 // pred_check_branch
        %182 = sbr.rel (%p179) target = $region12
      $region11: #{embedding_layer_forward.1} parent=5 // pred_region
        %s183 = ssub.s32 %s12, 1
        // Predicated region
        $region13: #{embedding_layer_forward.1} parent=11 // pred_check
          %p184 = pneg %p73
        $region14: #{embedding_layer_forward.1} parent=11 // pred_check_branch
          %186 = sbr.rel (%p184) target = $region16
        $region15: #{embedding_layer_forward.1} parent=11 // pred_region
          _
        $region16: #{embedding_layer_forward.1} parent=11 // pred_fallthru
          _
        // Predicated region
        $region17: #{embedding_layer_forward.1} parent=11 // pred_check
          %p187 = pneg %p94
        $region18: #{embedding_layer_forward.1} parent=11 // pred_check_branch
          %189 = sbr.rel (%p187) target = $region20
        $region19: #{embedding_layer_forward.1} parent=11 // pred_region
          _
        $region20: #{embedding_layer_forward.1} parent=11 // pred_fallthru
          _
        // Predicated region
        $region21: #{embedding_layer_forward.1} parent=11 // pred_check
          %p190 = pneg %p115
        $region22: #{embedding_layer_forward.1} parent=11 // pred_check_branch
          %192 = sbr.rel (%p190) target = $region24
        $region23: #{embedding_layer_forward.1} parent=11 // pred_region
          _
        $region24: #{embedding_layer_forward.1} parent=11 // pred_fallthru
          _
      $region12: #{embedding_layer_forward.1} parent=5 // pred_fallthru
        _
      %p193 = scmp.lt.s32.totalorder %s12, 4
      // Predicated region
      $region25: #{embedding_layer_forward.1} parent=5 // pred_check
        %p194 = pneg %p193
      $region26: #{embedding_layer_forward.1} parent=5 // pred_check_branch
        %196 = sbr.rel (%p194) target = $region28
      $region27: #{embedding_layer_forward.1} parent=5 // pred_region
        // Predicated region
        $region29: #{embedding_layer_forward.1} parent=27 // pred_check
          %p197 = pneg %p46
        $region30: #{embedding_layer_forward.1} parent=27 // pred_check_branch
          %199 = sbr.rel (%p197) target = $region32
        $region31: #{embedding_layer_forward.1} parent=27 // pred_region
          %s200 = sand.u32 %s36, 1
          %s201 = sand.u32 %s36, 1
          %s202 = smul.addr %s201, 512
          %s203 = scalar_lea.vmem [#allocation2], %s202
          %s204 = smul.u32 4, %s20
          %s205 = smul.addr %s19, 128
          %s206 = sadd.s32 %s204, %s205
          %s207 = smul.addr %s206, 8
          %s208 = scalar_lea.vmem %s0, %s207
          // Predicated region
          $region33: #{embedding_layer_forward.1} parent=31 // pred_check
            _
          $region34: #{embedding_layer_forward.1} parent=31 // pred_check_branch
            %210 = sbr.rel (0) target = $region36
          $region35: #{embedding_layer_forward.1} parent=31 // pred_region
            // Predicated region
            $region37: #{embedding_layer_forward.1} parent=35 // pred_check
              _
            $region38: #{embedding_layer_forward.1} parent=35 // pred_check_branch
              %212 = sbr.rel (0) target = $region40
            $region39: #{embedding_layer_forward.1} parent=35 // pred_region
              loop: start=0, step=1, limit=1
              $region41: #{embedding_layer_forward.1} parent=39 // loop_pre_header
                _
              $region42: #{embedding_layer_forward.1} parent=39 // loop_header
                %s214 = sphi 0, %s218
                %p215 = scmp.ge.s32.totalorder %s214, 1
                %s219 = sphi %s208, %s208
                %s220 = sphi %s203, %s203
              $region43: #{embedding_layer_forward.1} parent=39 // loop_header_branch
                %217 = sbr.rel (%p215) target = $region47
              $region44: #{embedding_layer_forward.1} parent=39 // loop_body
                %v221 = vld [vmem:[%s219] sm:$0xff]
                %222 = vst [vmem:[%s220] sm:$0xff] %v221
                %v223 = vld [vmem:[%s219 + $0x8] sm:$0xff]
                %224 = vst [vmem:[%s220 + $0x8] sm:$0xff] %v223
                %v225 = vld [vmem:[%s219 + $0x10] sm:$0xff]
                %226 = vst [vmem:[%s220 + $0x10] sm:$0xff] %v225
                %v227 = vld [vmem:[%s219 + $0x18] sm:$0xff]
                %228 = vst [vmem:[%s220 + $0x18] sm:$0xff] %v227
                %v229 = vld [vmem:[%s219 + $0x40] sm:$0xff]
                %230 = vst [vmem:[%s220 + $0x20] sm:$0xff] %v229
                %v231 = vld [vmem:[%s219 + $0x48] sm:$0xff]
                %232 = vst [vmem:[%s220 + $0x28] sm:$0xff] %v231
                %v233 = vld [vmem:[%s219 + $0x50] sm:$0xff]
                %234 = vst [vmem:[%s220 + $0x30] sm:$0xff] %v233
                %v235 = vld [vmem:[%s219 + $0x58] sm:$0xff]
                %236 = vst [vmem:[%s220 + $0x38] sm:$0xff] %v235
                %v237 = vld [vmem:[%s219 + $0x80] sm:$0xff]
                %238 = vst [vmem:[%s220 + $0x40] sm:$0xff] %v237
                %v239 = vld [vmem:[%s219 + $0x88] sm:$0xff]
                %240 = vst [vmem:[%s220 + $0x48] sm:$0xff] %v239
                %v241 = vld [vmem:[%s219 + $0x90] sm:$0xff]
                %242 = vst [vmem:[%s220 + $0x50] sm:$0xff] %v241
                %v243 = vld [vmem:[%s219 + $0x98] sm:$0xff]
                %244 = vst [vmem:[%s220 + $0x58] sm:$0xff] %v243
                %v245 = vld [vmem:[%s219 + $0xc0] sm:$0xff]
                %246 = vst [vmem:[%s220 + $0x60] sm:$0xff] %v245
                %v247 = vld [vmem:[%s219 + $0xc8] sm:$0xff]
                %248 = vst [vmem:[%s220 + $0x68] sm:$0xff] %v247
                %v249 = vld [vmem:[%s219 + $0xd0] sm:$0xff]
                %250 = vst [vmem:[%s220 + $0x70] sm:$0xff] %v249
                %v251 = vld [vmem:[%s219 + $0xd8] sm:$0xff]
                %252 = vst [vmem:[%s220 + $0x78] sm:$0xff] %v251
                %v253 = vld [vmem:[%s219 + $0x100] sm:$0xff]
                %254 = vst [vmem:[%s220 + $0x80] sm:$0xff] %v253
                %v255 = vld [vmem:[%s219 + $0x108] sm:$0xff]
                %256 = vst [vmem:[%s220 + $0x88] sm:$0xff] %v255
                %v257 = vld [vmem:[%s219 + $0x110] sm:$0xff]
                %258 = vst [vmem:[%s220 + $0x90] sm:$0xff] %v257
                %v259 = vld [vmem:[%s219 + $0x118] sm:$0xff]
                %260 = vst [vmem:[%s220 + $0x98] sm:$0xff] %v259
                %v261 = vld [vmem:[%s219 + $0x140] sm:$0xff]
                %262 = vst [vmem:[%s220 + $0xa0] sm:$0xff] %v261
                %v263 = vld [vmem:[%s219 + $0x148] sm:$0xff]
                %264 = vst [vmem:[%s220 + $0xa8] sm:$0xff] %v263
                %v265 = vld [vmem:[%s219 + $0x150] sm:$0xff]
                %266 = vst [vmem:[%s220 + $0xb0] sm:$0xff] %v265
                %v267 = vld [vmem:[%s219 + $0x158] sm:$0xff]
                %268 = vst [vmem:[%s220 + $0xb8] sm:$0xff] %v267
                %v269 = vld [vmem:[%s219 + $0x180] sm:$0xff]
                %270 = vst [vmem:[%s220 + $0xc0] sm:$0xff] %v269
                %v271 = vld [vmem:[%s219 + $0x188] sm:$0xff]
                %272 = vst [vmem:[%s220 + $0xc8] sm:$0xff] %v271
                %v273 = vld [vmem:[%s219 + $0x190] sm:$0xff]
                %274 = vst [vmem:[%s220 + $0xd0] sm:$0xff] %v273
                %v275 = vld [vmem:[%s219 + $0x198] sm:$0xff]
                %276 = vst [vmem:[%s220 + $0xd8] sm:$0xff] %v275
                %v277 = vld [vmem:[%s219 + $0x1c0] sm:$0xff]
                %278 = vst [vmem:[%s220 + $0xe0] sm:$0xff] %v277
                %v279 = vld [vmem:[%s219 + $0x1c8] sm:$0xff]
                %280 = vst [vmem:[%s220 + $0xe8] sm:$0xff] %v279
                %v281 = vld [vmem:[%s219 + $0x1d0] sm:$0xff]
                %282 = vst [vmem:[%s220 + $0xf0] sm:$0xff] %v281
                %v283 = vld [vmem:[%s219 + $0x1d8] sm:$0xff]
                %284 = vst [vmem:[%s220 + $0xf8] sm:$0xff] %v283
                %v285 = vld [vmem:[%s219 + $0x200] sm:$0xff]
                %286 = vst [vmem:[%s220 + $0x100] sm:$0xff] %v285
                %v287 = vld [vmem:[%s219 + $0x208] sm:$0xff]
                %288 = vst [vmem:[%s220 + $0x108] sm:$0xff] %v287
                %v289 = vld [vmem:[%s219 + $0x210] sm:$0xff]
                %290 = vst [vmem:[%s220 + $0x110] sm:$0xff] %v289
                %v291 = vld [vmem:[%s219 + $0x218] sm:$0xff]
                %292 = vst [vmem:[%s220 + $0x118] sm:$0xff] %v291
                %v293 = vld [vmem:[%s219 + $0x240] sm:$0xff]
                %294 = vst [vmem:[%s220 + $0x120] sm:$0xff] %v293
                %v295 = vld [vmem:[%s219 + $0x248] sm:$0xff]
                %296 = vst [vmem:[%s220 + $0x128] sm:$0xff] %v295
                %v297 = vld [vmem:[%s219 + $0x250] sm:$0xff]
                %298 = vst [vmem:[%s220 + $0x130] sm:$0xff] %v297
                %v299 = vld [vmem:[%s219 + $0x258] sm:$0xff]
                %300 = vst [vmem:[%s220 + $0x138] sm:$0xff] %v299
                %v301 = vld [vmem:[%s219 + $0x280] sm:$0xff]
                %302 = vst [vmem:[%s220 + $0x140] sm:$0xff] %v301
                %v303 = vld [vmem:[%s219 + $0x288] sm:$0xff]
                %304 = vst [vmem:[%s220 + $0x148] sm:$0xff] %v303
                %v305 = vld [vmem:[%s219 + $0x290] sm:$0xff]
                %306 = vst [vmem:[%s220 + $0x150] sm:$0xff] %v305
                %v307 = vld [vmem:[%s219 + $0x298] sm:$0xff]
                %308 = vst [vmem:[%s220 + $0x158] sm:$0xff] %v307
                %v309 = vld [vmem:[%s219 + $0x2c0] sm:$0xff]
                %310 = vst [vmem:[%s220 + $0x160] sm:$0xff] %v309
                %v311 = vld [vmem:[%s219 + $0x2c8] sm:$0xff]
                %312 = vst [vmem:[%s220 + $0x168] sm:$0xff] %v311
                %v313 = vld [vmem:[%s219 + $0x2d0] sm:$0xff]
                %314 = vst [vmem:[%s220 + $0x170] sm:$0xff] %v313
                %v315 = vld [vmem:[%s219 + $0x2d8] sm:$0xff]
                %316 = vst [vmem:[%s220 + $0x178] sm:$0xff] %v315
                %v317 = vld [vmem:[%s219 + $0x300] sm:$0xff]
                %318 = vst [vmem:[%s220 + $0x180] sm:$0xff] %v317
                %v319 = vld [vmem:[%s219 + $0x308] sm:$0xff]
                %320 = vst [vmem:[%s220 + $0x188] sm:$0xff] %v319
                %v321 = vld [vmem:[%s219 + $0x310] sm:$0xff]
                %322 = vst [vmem:[%s220 + $0x190] sm:$0xff] %v321
                %v323 = vld [vmem:[%s219 + $0x318] sm:$0xff]
                %324 = vst [vmem:[%s220 + $0x198] sm:$0xff] %v323
                %v325 = vld [vmem:[%s219 + $0x340] sm:$0xff]
                %326 = vst [vmem:[%s220 + $0x1a0] sm:$0xff] %v325
                %v327 = vld [vmem:[%s219 + $0x348] sm:$0xff]
                %328 = vst [vmem:[%s220 + $0x1a8] sm:$0xff] %v327
                %v329 = vld [vmem:[%s219 + $0x350] sm:$0xff]
                %330 = vst [vmem:[%s220 + $0x1b0] sm:$0xff] %v329
                %v331 = vld [vmem:[%s219 + $0x358] sm:$0xff]
                %332 = vst [vmem:[%s220 + $0x1b8] sm:$0xff] %v331
                %v333 = vld [vmem:[%s219 + $0x380] sm:$0xff]
                %334 = vst [vmem:[%s220 + $0x1c0] sm:$0xff] %v333
                %v335 = vld [vmem:[%s219 + $0x388] sm:$0xff]
                %336 = vst [vmem:[%s220 + $0x1c8] sm:$0xff] %v335
                %v337 = vld [vmem:[%s219 + $0x390] sm:$0xff]
                %338 = vst [vmem:[%s220 + $0x1d0] sm:$0xff] %v337
                %v339 = vld [vmem:[%s219 + $0x398] sm:$0xff]
                %340 = vst [vmem:[%s220 + $0x1d8] sm:$0xff] %v339
                %v341 = vld [vmem:[%s219 + $0x3c0] sm:$0xff]
                %342 = vst [vmem:[%s220 + $0x1e0] sm:$0xff] %v341
                %v343 = vld [vmem:[%s219 + $0x3c8] sm:$0xff]
                %344 = vst [vmem:[%s220 + $0x1e8] sm:$0xff] %v343
                %v345 = vld [vmem:[%s219 + $0x3d0] sm:$0xff]
                %346 = vst [vmem:[%s220 + $0x1f0] sm:$0xff] %v345
                %v347 = vld [vmem:[%s219 + $0x3d8] sm:$0xff]
                %348 = vst [vmem:[%s220 + $0x1f8] sm:$0xff] %v347
              $region45: #{embedding_layer_forward.1} parent=39 // loop_footer
                %s218 = sadd.s32 1, %s214
              $region46: #{embedding_layer_forward.1} parent=39 // loop_footer_branch
                %213 = sbr.rel target = $region42
              $region47: #{embedding_layer_forward.1} parent=39 // loop_exit
                _
            $region40: #{embedding_layer_forward.1} parent=35 // pred_fallthru
              _
            // Predicated region
            $region48: #{embedding_layer_forward.1} parent=35 // pred_check
              _
            $region49: #{embedding_layer_forward.1} parent=35 // pred_check_branch
              %350 = sbr.rel target = $region51
            $region50: #{embedding_layer_forward.1} parent=35 // pred_region
              _
            $region51: #{embedding_layer_forward.1} parent=35 // pred_fallthru
              _
          $region36: #{embedding_layer_forward.1} parent=31 // pred_fallthru
            _
          %351 = vnop
        $region32: #{embedding_layer_forward.1} parent=27 // pred_fallthru
          _
      $region28: #{embedding_layer_forward.1} parent=5 // pred_fallthru
        _
      %p352 = scmp.le.s32.totalorder 1, %s12
      %p353 = scmp.lt.s32.totalorder %s12, 5
      %p354 = pnand %p352, %p353
      %p355 = pneg %p354
      // Predicated region
      $region52: #{embedding_layer_forward.1} parent=5 // pred_check
        _
      $region53: #{embedding_layer_forward.1} parent=5 // pred_check_branch
        %357 = sbr.rel (%p354) target = $region55
      $region54: #{embedding_layer_forward.1} parent=5 // pred_region
        %s358 = ssub.s32 %s12, 1
        %s359 = sand.u32 %s39, 1
        %s360 = sand.u32 %s39, 1
        %s361 = smul.addr %s360, 512
        %s362 = scalar_lea.vmem [#allocation2], %s361
        // Predicated region
        $region56: #{embedding_layer_forward.1} parent=54 // pred_check
          %p363 = pneg %p52
        $region57: #{embedding_layer_forward.1} parent=54 // pred_check_branch
          %365 = sbr.rel (%p363) target = $region59
        $region58: #{embedding_layer_forward.1} parent=54 // pred_region
          _
        $region59: #{embedding_layer_forward.1} parent=54 // pred_fallthru
          _
        %s366 = sand.u32 %s39, 1
        %s367 = sand.u32 %s39, 1
        %s368 = smul.addr %s367, 512
        %s369 = scalar_lea.vmem [#allocation2], %s368
        %p370 = pneg %p52
        %p371 = pneg %p49
        %p372 = pneg %p73
        %p373 = pneg %p70
        %p374 = pneg %p94
        %p375 = pneg %p91
        %p376 = pneg %p115
        %p377 = pneg %p112
        %p378 = pneg %p143
        %p379 = pneg %p140
        %s380 = smul.u32 64, %s22
        %p381 = scmp.lt.s32.totalorder %s21, 1
        %s382 = scalar_select %p381, %s21, 1
        %p383 = scmp.lt.s32.totalorder %s380, 127
        %s384 = scalar_select %p383, %s380, 127
        %s385 = smul.addr %s384, 2
        %s386 = smul.addr %s382, 256
        %s387 = sadd.s32 %s385, %s386
        %s388 = smul.addr %s387, 8
        %s389 = scalar_lea.vmem %s4, %s388
        %p390 = pneg %p169
        %p391 = pneg %p166
        %p392 = scmp.lt.s32.totalorder %s21, 1
        %s393 = scalar_select %p392, %s21, 1
        %s394 = smul.addr %s393, 2
        %s395 = smul.addr %s394, 8
        %s396 = scalar_lea.vmem %s5, %s395
        %s397 = smul.u32 4, %s22
        %s398 = smul.u32 64, %s22
        %p399 = scmp.lt.s32.totalorder %s21, 1
        %s400 = scalar_select %p399, %s21, 1
        %p401 = scmp.lt.s32.totalorder %s398, 127
        %s402 = scalar_select %p401, %s398, 127
        %s403 = smul.addr %s402, 2
        %s404 = smul.addr %s400, 256
        %s405 = sadd.s32 %s403, %s404
        %s406 = smul.addr %s405, 8
        %s407 = scalar_lea.vmem %s4, %s406
        %s408 = smul.u32 64, %s22
        %p409 = scmp.lt.s32.totalorder %s21, 1
        %s410 = scalar_select %p409, %s21, 1
        %s411 = smul.addr %s410, 2
        %s412 = smul.addr %s411, 8
        %s413 = scalar_lea.vmem %s5, %s412
        %v414 = vld [vmem:[%s362] sm:$0xff]
        %v415 = vld [vmem:[%s362 + $0x8] sm:$0xff]
        %v416 = vld [vmem:[%s362 + $0x10] sm:$0xff]
        %v417 = vld [vmem:[%s362 + $0x18] sm:$0xff]
        %v418 = vld [vmem:[%s362 + $0x20] sm:$0xff]
        %v419 = vld [vmem:[%s362 + $0x28] sm:$0xff]
        %v420 = vld [vmem:[%s362 + $0x30] sm:$0xff]
        %v421 = vld [vmem:[%s362 + $0x38] sm:$0xff]
        %v422 = vld [vmem:[%s362 + $0x40] sm:$0xff]
        %v423 = vld [vmem:[%s362 + $0x48] sm:$0xff]
        %v424 = vld [vmem:[%s362 + $0x50] sm:$0xff]
        %v425 = vld [vmem:[%s362 + $0x58] sm:$0xff]
        %v426 = vld [vmem:[%s362 + $0x60] sm:$0xff]
        %v427 = vld [vmem:[%s362 + $0x68] sm:$0xff]
        %v428 = vld [vmem:[%s362 + $0x70] sm:$0xff]
        %v429 = vld [vmem:[%s362 + $0x78] sm:$0xff]
        %v430 = vld [vmem:[%s362 + $0x80] sm:$0xff]
        %v431 = vld [vmem:[%s362 + $0x88] sm:$0xff]
        %v432 = vld [vmem:[%s362 + $0x90] sm:$0xff]
        %v433 = vld [vmem:[%s362 + $0x98] sm:$0xff]
        %v434 = vld [vmem:[%s362 + $0xa0] sm:$0xff]
        %v435 = vld [vmem:[%s362 + $0xa8] sm:$0xff]
        %v436 = vld [vmem:[%s362 + $0xb0] sm:$0xff]
        %v437 = vld [vmem:[%s362 + $0xb8] sm:$0xff]
        %v438 = vld [vmem:[%s362 + $0xc0] sm:$0xff]
        %v439 = vld [vmem:[%s362 + $0xc8] sm:$0xff]
        %v440 = vld [vmem:[%s362 + $0xd0] sm:$0xff]
        %v441 = vld [vmem:[%s362 + $0xd8] sm:$0xff]
        %v442 = vld [vmem:[%s362 + $0xe0] sm:$0xff]
        %v443 = vld [vmem:[%s362 + $0xe8] sm:$0xff]
        %v444 = vld [vmem:[%s362 + $0xf0] sm:$0xff]
        %v445 = vld [vmem:[%s362 + $0xf8] sm:$0xff]
        %v446 = vld [vmem:[%s362 + $0x100] sm:$0xff]
        %v447 = vld [vmem:[%s362 + $0x108] sm:$0xff]
        %v448 = vld [vmem:[%s362 + $0x110] sm:$0xff]
        %v449 = vld [vmem:[%s362 + $0x118] sm:$0xff]
        %v450 = vld [vmem:[%s362 + $0x120] sm:$0xff]
        %v451 = vld [vmem:[%s362 + $0x128] sm:$0xff]
        %v452 = vld [vmem:[%s362 + $0x130] sm:$0xff]
        %v453 = vld [vmem:[%s362 + $0x138] sm:$0xff]
        %v454 = vld [vmem:[%s362 + $0x140] sm:$0xff]
        %v455 = vld [vmem:[%s362 + $0x148] sm:$0xff]
        %v456 = vld [vmem:[%s362 + $0x150] sm:$0xff]
        %v457 = vld [vmem:[%s362 + $0x158] sm:$0xff]
        %v458 = vld [vmem:[%s362 + $0x160] sm:$0xff]
        %v459 = vld [vmem:[%s362 + $0x168] sm:$0xff]
        %v460 = vld [vmem:[%s362 + $0x170] sm:$0xff]
        %v461 = vld [vmem:[%s362 + $0x178] sm:$0xff]
        %v462 = vld [vmem:[%s362 + $0x180] sm:$0xff]
        %v463 = vld [vmem:[%s362 + $0x188] sm:$0xff]
        %v464 = vld [vmem:[%s362 + $0x190] sm:$0xff]
        %v465 = vld [vmem:[%s362 + $0x198] sm:$0xff]
        %v466 = vld [vmem:[%s362 + $0x1a0] sm:$0xff]
        %v467 = vld [vmem:[%s362 + $0x1a8] sm:$0xff]
        %v468 = vld [vmem:[%s362 + $0x1b0] sm:$0xff]
        %v469 = vld [vmem:[%s362 + $0x1b8] sm:$0xff]
        %v470 = vld [vmem:[%s362 + $0x1c0] sm:$0xff]
        %v471 = vld [vmem:[%s362 + $0x1c8] sm:$0xff]
        %v472 = vld [vmem:[%s362 + $0x1d0] sm:$0xff]
        %v473 = vld [vmem:[%s362 + $0x1d8] sm:$0xff]
        %v474 = vld [vmem:[%s362 + $0x1e0] sm:$0xff]
        %v475 = vld [vmem:[%s362 + $0x1e8] sm:$0xff]
        %v476 = vld [vmem:[%s362 + $0x1f0] sm:$0xff]
        %v477 = vld [vmem:[%s362 + $0x1f8] sm:$0xff]
        %v478 = vld [vmem:[%s2] sm:$0xff]
        %v479 = vld [vmem:[%s2 + $0x8] sm:$0xff]
        %v480 = vld [vmem:[%s2 + $0x10] sm:$0xff]
        %v481 = vld [vmem:[%s2 + $0x18] sm:$0xff]
        %v482 = vld [vmem:[%s2 + $0x20] sm:$0xff]
        %v483 = vld [vmem:[%s2 + $0x28] sm:$0xff]
        %v484 = vld [vmem:[%s2 + $0x30] sm:$0xff]
        %v485 = vld [vmem:[%s2 + $0x38] sm:$0xff]
        %v486 = vld [vmem:[%s2 + $0x40] sm:$0xff]
        %v487 = vld [vmem:[%s2 + $0x48] sm:$0xff]
        %v488 = vld [vmem:[%s2 + $0x50] sm:$0xff]
        %v489 = vld [vmem:[%s2 + $0x58] sm:$0xff]
        %v490 = vld [vmem:[%s2 + $0x60] sm:$0xff]
        %v491 = vld [vmem:[%s2 + $0x68] sm:$0xff]
        %v492 = vld [vmem:[%s2 + $0x70] sm:$0xff]
        %v493 = vld [vmem:[%s2 + $0x78] sm:$0xff]
        %v494 = vld [vmem:[%s2 + $0x80] sm:$0xff]
        %v495 = vld [vmem:[%s2 + $0x88] sm:$0xff]
        %v496 = vld [vmem:[%s2 + $0x90] sm:$0xff]
        %v497 = vld [vmem:[%s2 + $0x98] sm:$0xff]
        %v498 = vld [vmem:[%s2 + $0xa0] sm:$0xff]
        %v499 = vld [vmem:[%s2 + $0xa8] sm:$0xff]
        %v500 = vld [vmem:[%s2 + $0xb0] sm:$0xff]
        %v501 = vld [vmem:[%s2 + $0xb8] sm:$0xff]
        %v502 = vld [vmem:[%s2 + $0xc0] sm:$0xff]
        %v503 = vld [vmem:[%s2 + $0xc8] sm:$0xff]
        %v504 = vld [vmem:[%s2 + $0xd0] sm:$0xff]
        %v505 = vld [vmem:[%s2 + $0xd8] sm:$0xff]
        %v506 = vld [vmem:[%s2 + $0xe0] sm:$0xff]
        %v507 = vld [vmem:[%s2 + $0xe8] sm:$0xff]
        %v508 = vld [vmem:[%s2 + $0xf0] sm:$0xff]
        %v509 = vld [vmem:[%s2 + $0xf8] sm:$0xff]
        %v510 = vld [vmem:[%s3] sm:$0x3]
        %v512 = vlaneseq
        %v513 = vshrl.u32 %v512, 7
        %v514 = vsub.s32 0, %v513
        %v515 = vrot.slane %v510, %v514
        %v516 = vlaneseq
        %v517 = vshrl.u32 %v516, 7
        %v518 = vsub.s32 1, %v517
        %v519 = vrot.slane %v510, %v518
        %522 = vxpose.xlu0.b32.start [1/16] %v414, 128
        %523 = vxpose.xlu0.b32.cont [2/16] %v418, 128
        %524 = vxpose.xlu0.b32.cont [3/16] %v422, 128
        %525 = vxpose.xlu0.b32.cont [4/16] %v426, 128
        %526 = vxpose.xlu0.b32.cont [5/16] %v430, 128
        %527 = vxpose.xlu0.b32.cont [6/16] %v434, 128
        %528 = vxpose.xlu0.b32.cont [7/16] %v438, 128
        %529 = vxpose.xlu0.b32.cont [8/16] %v442, 128
        %530 = vxpose.xlu0.b32.cont [9/16] %v446, 128
        %531 = vxpose.xlu0.b32.cont [10/16] %v450, 128
        %532 = vxpose.xlu0.b32.cont [11/16] %v454, 128
        %533 = vxpose.xlu0.b32.cont [12/16] %v458, 128
        %534 = vxpose.xlu0.b32.cont [13/16] %v462, 128
        %535 = vxpose.xlu0.b32.cont [14/16] %v466, 128
        %536 = vxpose.xlu0.b32.cont [15/16] %v470, 128
        %537 = vxpose.xlu0.b32.end [16/16] %v474, 128
        %v538 = vpop.trf.xlu0
        %v539 = vpop.trf.xlu0
        %v540 = vpop.trf.xlu0
        %v541 = vpop.trf.xlu0
        %v542 = vpop.trf.xlu0
        %v543 = vpop.trf.xlu0
        %v544 = vpop.trf.xlu0
        %v545 = vpop.trf.xlu0
        %v546 = vpop.trf.xlu0
        %v547 = vpop.trf.xlu0
        %v548 = vpop.trf.xlu0
        %v549 = vpop.trf.xlu0
        %v550 = vpop.trf.xlu0
        %v551 = vpop.trf.xlu0
        %v552 = vpop.trf.xlu0
        %v553 = vpop.trf.xlu0
        %554 = vxpose.xlu0.b32.start [1/16] %v415, 128
        %555 = vxpose.xlu0.b32.cont [2/16] %v419, 128
        %556 = vxpose.xlu0.b32.cont [3/16] %v423, 128
        %557 = vxpose.xlu0.b32.cont [4/16] %v427, 128
        %558 = vxpose.xlu0.b32.cont [5/16] %v431, 128
        %559 = vxpose.xlu0.b32.cont [6/16] %v435, 128
        %560 = vxpose.xlu0.b32.cont [7/16] %v439, 128
        %561 = vxpose.xlu0.b32.cont [8/16] %v443, 128
        %562 = vxpose.xlu0.b32.cont [9/16] %v447, 128
        %563 = vxpose.xlu0.b32.cont [10/16] %v451, 128
        %564 = vxpose.xlu0.b32.cont [11/16] %v455, 128
        %565 = vxpose.xlu0.b32.cont [12/16] %v459, 128
        %566 = vxpose.xlu0.b32.cont [13/16] %v463, 128
        %567 = vxpose.xlu0.b32.cont [14/16] %v467, 128
        %568 = vxpose.xlu0.b32.cont [15/16] %v471, 128
        %569 = vxpose.xlu0.b32.end [16/16] %v475, 128
        %v570 = vpop.trf.xlu0
        %v571 = vpop.trf.xlu0
        %v572 = vpop.trf.xlu0
        %v573 = vpop.trf.xlu0
        %v574 = vpop.trf.xlu0
        %v575 = vpop.trf.xlu0
        %v576 = vpop.trf.xlu0
        %v577 = vpop.trf.xlu0
        %v578 = vpop.trf.xlu0
        %v579 = vpop.trf.xlu0
        %v580 = vpop.trf.xlu0
        %v581 = vpop.trf.xlu0
        %v582 = vpop.trf.xlu0
        %v583 = vpop.trf.xlu0
        %v584 = vpop.trf.xlu0
        %v585 = vpop.trf.xlu0
        %586 = vxpose.xlu0.b32.start [1/16] %v416, 128
        %587 = vxpose.xlu0.b32.cont [2/16] %v420, 128
        %588 = vxpose.xlu0.b32.cont [3/16] %v424, 128
        %589 = vxpose.xlu0.b32.cont [4/16] %v428, 128
        %590 = vxpose.xlu0.b32.cont [5/16] %v432, 128
        %591 = vxpose.xlu0.b32.cont [6/16] %v436, 128
        %592 = vxpose.xlu0.b32.cont [7/16] %v440, 128
        %593 = vxpose.xlu0.b32.cont [8/16] %v444, 128
        %594 = vxpose.xlu0.b32.cont [9/16] %v448, 128
        %595 = vxpose.xlu0.b32.cont [10/16] %v452, 128
        %596 = vxpose.xlu0.b32.cont [11/16] %v456, 128
        %597 = vxpose.xlu0.b32.cont [12/16] %v460, 128
        %598 = vxpose.xlu0.b32.cont [13/16] %v464, 128
        %599 = vxpose.xlu0.b32.cont [14/16] %v468, 128
        %600 = vxpose.xlu0.b32.cont [15/16] %v472, 128
        %601 = vxpose.xlu0.b32.end [16/16] %v476, 128
        %v602 = vpop.trf.xlu0
        %v603 = vpop.trf.xlu0
        %v604 = vpop.trf.xlu0
        %v605 = vpop.trf.xlu0
        %v606 = vpop.trf.xlu0
        %v607 = vpop.trf.xlu0
        %v608 = vpop.trf.xlu0
        %v609 = vpop.trf.xlu0
        %v610 = vpop.trf.xlu0
        %v611 = vpop.trf.xlu0
        %v612 = vpop.trf.xlu0
        %v613 = vpop.trf.xlu0
        %v614 = vpop.trf.xlu0
        %v615 = vpop.trf.xlu0
        %v616 = vpop.trf.xlu0
        %v617 = vpop.trf.xlu0
        %618 = vxpose.xlu0.b32.start [1/16] %v417, 128
        %619 = vxpose.xlu0.b32.cont [2/16] %v421, 128
        %620 = vxpose.xlu0.b32.cont [3/16] %v425, 128
        %621 = vxpose.xlu0.b32.cont [4/16] %v429, 128
        %622 = vxpose.xlu0.b32.cont [5/16] %v433, 128
        %623 = vxpose.xlu0.b32.cont [6/16] %v437, 128
        %624 = vxpose.xlu0.b32.cont [7/16] %v441, 128
        %625 = vxpose.xlu0.b32.cont [8/16] %v445, 128
        %626 = vxpose.xlu0.b32.cont [9/16] %v449, 128
        %627 = vxpose.xlu0.b32.cont [10/16] %v453, 128
        %628 = vxpose.xlu0.b32.cont [11/16] %v457, 128
        %629 = vxpose.xlu0.b32.cont [12/16] %v461, 128
        %630 = vxpose.xlu0.b32.cont [13/16] %v465, 128
        %631 = vxpose.xlu0.b32.cont [14/16] %v469, 128
        %632 = vxpose.xlu0.b32.cont [15/16] %v473, 128
        %633 = vxpose.xlu0.b32.end [16/16] %v477, 128
        %v634 = vpop.trf.xlu0
        %v635 = vpop.trf.xlu0
        %v636 = vpop.trf.xlu0
        %v637 = vpop.trf.xlu0
        %v638 = vpop.trf.xlu0
        %v639 = vpop.trf.xlu0
        %v640 = vpop.trf.xlu0
        %v641 = vpop.trf.xlu0
        %v642 = vpop.trf.xlu0
        %v643 = vpop.trf.xlu0
        %v644 = vpop.trf.xlu0
        %v645 = vpop.trf.xlu0
        %v646 = vpop.trf.xlu0
        %v647 = vpop.trf.xlu0
        %v648 = vpop.trf.xlu0
        %v649 = vpop.trf.xlu0
        %650 = vmatprep.subr.mxu0 %v479
        %651 = vmatpush1.msra.mxu0 %v478
        %652 = vmatprep.subr.mxu0 %v481
        %653 = vmatpush1.msra.mxu0 %v480
        %654 = vmatprep.subr.mxu0 %v483
        %655 = vmatpush1.msra.mxu0 %v482
        %656 = vmatprep.subr.mxu0 %v485
        %657 = vmatpush1.msra.mxu0 %v484
        %658 = vmatprep.subr.mxu0 %v487
        %659 = vmatpush1.msra.mxu0 %v486
        %660 = vmatprep.subr.mxu0 %v489
        %661 = vmatpush1.msra.mxu0 %v488
        %662 = vmatprep.subr.mxu0 %v491
        %663 = vmatpush1.msra.mxu0 %v490
        %664 = vmatprep.subr.mxu0 %v493
        %665 = vmatpush1.msra.mxu0 %v492
        %666 = vmatprep.subr.mxu0 %v495
        %667 = vmatpush1.msra.mxu0 %v494
        %668 = vmatprep.subr.mxu0 %v497
        %669 = vmatpush1.msra.mxu0 %v496
        %670 = vmatprep.subr.mxu0 %v499
        %671 = vmatpush1.msra.mxu0 %v498
        %672 = vmatprep.subr.mxu0 %v501
        %673 = vmatpush1.msra.mxu0 %v500
        %674 = vmatprep.subr.mxu0 %v503
        %675 = vmatpush1.msra.mxu0 %v502
        %676 = vmatprep.subr.mxu0 %v505
        %677 = vmatpush1.msra.mxu0 %v504
        %678 = vmatprep.subr.mxu0 %v507
        %679 = vmatpush1.msra.mxu0 %v506
        %680 = vmatprep.subr.mxu0 %v509
        %681 = vmatpush1.msra.mxu0 %v508
        %682 = vmatprep.subr.mxu0 0.0
        %683 = vmatpush1.msra.mxu0 0.0
        %684 = vmatprep.subr.mxu0 0.0
        %685 = vmatpush1.msra.mxu0 0.0
        %686 = vmatprep.subr.mxu0 0.0
        %687 = vmatpush1.msra.mxu0 0.0
        %688 = vmatprep.subr.mxu0 0.0
        %689 = vmatpush1.msra.mxu0 0.0
        %690 = vmatprep.subr.mxu0 0.0
        %691 = vmatpush1.msra.mxu0 0.0
        %692 = vmatprep.subr.mxu0 0.0
        %693 = vmatpush1.msra.mxu0 0.0
        %694 = vmatprep.subr.mxu0 0.0
        %695 = vmatpush1.msra.mxu0 0.0
        %696 = vmatprep.subr.mxu0 0.0
        %697 = vmatpush1.msra.mxu0 0.0
        %698 = vmatprep.subr.mxu0 0.0
        %699 = vmatpush1.msra.mxu0 0.0
        %700 = vmatprep.subr.mxu0 0.0
        %701 = vmatpush1.msra.mxu0 0.0
        %702 = vmatprep.subr.mxu0 0.0
        %703 = vmatpush1.msra.mxu0 0.0
        %704 = vmatprep.subr.mxu0 0.0
        %705 = vmatpush1.msra.mxu0 0.0
        %706 = vmatprep.subr.mxu0 0.0
        %707 = vmatpush1.msra.mxu0 0.0
        %708 = vmatprep.subr.mxu0 0.0
        %709 = vmatpush1.msra.mxu0 0.0
        %710 = vmatprep.subr.mxu0 0.0
        %711 = vmatpush1.msra.mxu0 0.0
        %712 = vmatprep.subr.mxu0 0.0
        %713 = vmatpush1.msra.mxu0 0.0
        %714 = vmatprep.mubr.f32.mxu0 0.0
        %715 = vmatmul.mubr.f32.gmra.mrb[0].mxu0 %v538
        %v716 = vpop.f32.mrb[0].mxu0
        %v717 = vadd.f32 %v515, %v716
        %v718 = vpop.f32.mrb[0].mxu0
        %v719 = vadd.f32 %v519, %v718
        %720 = vmatprep.mubr.f32.mxu0 0.0
        %721 = vmatmul.mubr.f32.gmra.mrb[0].mxu0 %v539
        %v722 = vpop.f32.mrb[0].mxu0
        %v723 = vadd.f32 %v515, %v722
        %v724 = vpop.f32.mrb[0].mxu0
        %v725 = vadd.f32 %v519, %v724
        %726 = vmatprep.mubr.f32.mxu0 0.0
        %727 = vmatmul.mubr.f32.gmra.mrb[0].mxu0 %v540
        %v728 = vpop.f32.mrb[0].mxu0
        %v729 = vadd.f32 %v515, %v728
        %v730 = vpop.f32.mrb[0].mxu0
        %v731 = vadd.f32 %v519, %v730
        %732 = vmatprep.mubr.f32.mxu0 0.0
        %733 = vmatmul.mubr.f32.gmra.mrb[0].mxu0 %v541
        %v734 = vpop.f32.mrb[0].mxu0
        %v735 = vadd.f32 %v515, %v734
        %v736 = vpop.f32.mrb[0].mxu0
        %v737 = vadd.f32 %v519, %v736
        %738 = vmatprep.mubr.f32.mxu0 0.0
        %739 = vmatmul.mubr.f32.gmra.mrb[0].mxu0 %v542
        %v740 = vpop.f32.mrb[0].mxu0
        %v741 = vadd.f32 %v515, %v740
        %v742 = vpop.f32.mrb[0].mxu0
        %v743 = vadd.f32 %v519, %v742
        %744 = vmatprep.mubr.f32.mxu0 0.0
        %745 = vmatmul.mubr.f32.gmra.mrb[0].mxu0 %v543
        %v746 = vpop.f32.mrb[0].mxu0
        %v747 = vadd.f32 %v515, %v746
        %v748 = vpop.f32.mrb[0].mxu0
        %v749 = vadd.f32 %v519, %v748
        %750 = vmatprep.mubr.f32.mxu0 0.0
        %751 = vmatmul.mubr.f32.gmra.mrb[0].mxu0 %v544
        %v752 = vpop.f32.mrb[0].mxu0
        %v753 = vadd.f32 %v515, %v752
        %v754 = vpop.f32.mrb[0].mxu0
        %v755 = vadd.f32 %v519, %v754
        %756 = vmatprep.mubr.f32.mxu0 0.0
        %757 = vmatmul.mubr.f32.gmra.mrb[0].mxu0 %v545
        %v758 = vpop.f32.mrb[0].mxu0
        %v759 = vadd.f32 %v515, %v758
        %v760 = vpop.f32.mrb[0].mxu0
        %v761 = vadd.f32 %v519, %v760
        %762 = vmatprep.mubr.f32.mxu0 0.0
        %763 = vmatmul.mubr.f32.gmra.mrb[0].mxu0 %v546
        %v764 = vpop.f32.mrb[0].mxu0
        %v765 = vadd.f32 %v515, %v764
        %v766 = vpop.f32.mrb[0].mxu0
        %v767 = vadd.f32 %v519, %v766
        %768 = vmatprep.mubr.f32.mxu0 0.0
        %769 = vmatmul.mubr.f32.gmra.mrb[0].mxu0 %v547
        %v770 = vpop.f32.mrb[0].mxu0
        %v771 = vadd.f32 %v515, %v770
        %v772 = vpop.f32.mrb[0].mxu0
        %v773 = vadd.f32 %v519, %v772
        %774 = vmatprep.mubr.f32.mxu0 0.0
        %775 = vmatmul.mubr.f32.gmra.mrb[0].mxu0 %v548
        %v776 = vpop.f32.mrb[0].mxu0
        %v777 = vadd.f32 %v515, %v776
        %v778 = vpop.f32.mrb[0].mxu0
        %v779 = vadd.f32 %v519, %v778
        %780 = vmatprep.mubr.f32.mxu0 0.0
        %781 = vmatmul.mubr.f32.gmra.mrb[0].mxu0 %v549
        %v782 = vpop.f32.mrb[0].mxu0
        %v783 = vadd.f32 %v515, %v782
        %v784 = vpop.f32.mrb[0].mxu0
        %v785 = vadd.f32 %v519, %v784
        %786 = vmatprep.mubr.f32.mxu0 0.0
        %787 = vmatmul.mubr.f32.gmra.mrb[0].mxu0 %v550
        %v788 = vpop.f32.mrb[0].mxu0
        %v789 = vadd.f32 %v515, %v788
        %v790 = vpop.f32.mrb[0].mxu0
        %v791 = vadd.f32 %v519, %v790
        %792 = vmatprep.mubr.f32.mxu0 0.0
        %793 = vmatmul.mubr.f32.gmra.mrb[0].mxu0 %v551
        %v794 = vpop.f32.mrb[0].mxu0
        %v795 = vadd.f32 %v515, %v794
        %v796 = vpop.f32.mrb[0].mxu0
        %v797 = vadd.f32 %v519, %v796
        %798 = vmatprep.mubr.f32.mxu0 0.0
        %799 = vmatmul.mubr.f32.gmra.mrb[0].mxu0 %v552
        %v800 = vpop.f32.mrb[0].mxu0
        %v801 = vadd.f32 %v515, %v800
        %v802 = vpop.f32.mrb[0].mxu0
        %v803 = vadd.f32 %v519, %v802
        %804 = vmatprep.mubr.f32.mxu0 0.0
        %805 = vmatmul.mubr.f32.gmra.mrb[0].mxu0 %v553
        %v806 = vpop.f32.mrb[0].mxu0
        %v807 = vadd.f32 %v515, %v806
        %v808 = vpop.f32.mrb[0].mxu0
        %v809 = vadd.f32 %v519, %v808
        %810 = vmatprep.mubr.f32.mxu0 0.0
        %811 = vmatmul.mubr.f32.gmra.mrb[0].mxu0 %v570
        %v812 = vpop.f32.mrb[0].mxu0
        %v813 = vadd.f32 %v515, %v812
        %v814 = vpop.f32.mrb[0].mxu0
        %v815 = vadd.f32 %v519, %v814
        %816 = vmatprep.mubr.f32.mxu0 0.0
        %817 = vmatmul.mubr.f32.gmra.mrb[0].mxu0 %v571
        %v818 = vpop.f32.mrb[0].mxu0
        %v819 = vadd.f32 %v515, %v818
        %v820 = vpop.f32.mrb[0].mxu0
        %v821 = vadd.f32 %v519, %v820
        %822 = vmatprep.mubr.f32.mxu0 0.0
        %823 = vmatmul.mubr.f32.gmra.mrb[0].mxu0 %v572
        %v824 = vpop.f32.mrb[0].mxu0
        %v825 = vadd.f32 %v515, %v824
        %v826 = vpop.f32.mrb[0].mxu0
        %v827 = vadd.f32 %v519, %v826
        %828 = vmatprep.mubr.f32.mxu0 0.0
        %829 = vmatmul.mubr.f32.gmra.mrb[0].mxu0 %v573
        %v830 = vpop.f32.mrb[0].mxu0
        %v831 = vadd.f32 %v515, %v830
        %v832 = vpop.f32.mrb[0].mxu0
        %v833 = vadd.f32 %v519, %v832
        %834 = vmatprep.mubr.f32.mxu0 0.0
        %835 = vmatmul.mubr.f32.gmra.mrb[0].mxu0 %v574
        %v836 = vpop.f32.mrb[0].mxu0
        %v837 = vadd.f32 %v515, %v836
        %v838 = vpop.f32.mrb[0].mxu0
        %v839 = vadd.f32 %v519, %v838
        %840 = vmatprep.mubr.f32.mxu0 0.0
        %841 = vmatmul.mubr.f32.gmra.mrb[0].mxu0 %v575
        %v842 = vpop.f32.mrb[0].mxu0
        %v843 = vadd.f32 %v515, %v842
        %v844 = vpop.f32.mrb[0].mxu0
        %v845 = vadd.f32 %v519, %v844
        %846 = vmatprep.mubr.f32.mxu0 0.0
        %847 = vmatmul.mubr.f32.gmra.mrb[0].mxu0 %v576
        %v848 = vpop.f32.mrb[0].mxu0
        %v849 = vadd.f32 %v515, %v848
        %v850 = vpop.f32.mrb[0].mxu0
        %v851 = vadd.f32 %v519, %v850
        %852 = vmatprep.mubr.f32.mxu0 0.0
        %853 = vmatmul.mubr.f32.gmra.mrb[0].mxu0 %v577
        %v854 = vpop.f32.mrb[0].mxu0
        %v855 = vadd.f32 %v515, %v854
        %v856 = vpop.f32.mrb[0].mxu0
        %v857 = vadd.f32 %v519, %v856
        %858 = vmatprep.mubr.f32.mxu0 0.0
        %859 = vmatmul.mubr.f32.gmra.mrb[0].mxu0 %v578
        %v860 = vpop.f32.mrb[0].mxu0
        %v861 = vadd.f32 %v515, %v860
        %v862 = vpop.f32.mrb[0].mxu0
        %v863 = vadd.f32 %v519, %v862
        %864 = vmatprep.mubr.f32.mxu0 0.0
        %865 = vmatmul.mubr.f32.gmra.mrb[0].mxu0 %v579
        %v866 = vpop.f32.mrb[0].mxu0
        %v867 = vadd.f32 %v515, %v866
        %v868 = vpop.f32.mrb[0].mxu0
        %v869 = vadd.f32 %v519, %v868
        %870 = vmatprep.mubr.f32.mxu0 0.0
        %871 = vmatmul.mubr.f32.gmra.mrb[0].mxu0 %v580
        %v872 = vpop.f32.mrb[0].mxu0
        %v873 = vadd.f32 %v515, %v872
        %v874 = vpop.f32.mrb[0].mxu0
        %v875 = vadd.f32 %v519, %v874
        %876 = vmatprep.mubr.f32.mxu0 0.0
        %877 = vmatmul.mubr.f32.gmra.mrb[0].mxu0 %v581
        %v878 = vpop.f32.mrb[0].mxu0
        %v879 = vadd.f32 %v515, %v878
        %v880 = vpop.f32.mrb[0].mxu0
        %v881 = vadd.f32 %v519, %v880
        %882 = vmatprep.mubr.f32.mxu0 0.0
        %883 = vmatmul.mubr.f32.gmra.mrb[0].mxu0 %v582
        %v884 = vpop.f32.mrb[0].mxu0
        %v885 = vadd.f32 %v515, %v884
        %v886 = vpop.f32.mrb[0].mxu0
        %v887 = vadd.f32 %v519, %v886
        %888 = vmatprep.mubr.f32.mxu0 0.0
        %889 = vmatmul.mubr.f32.gmra.mrb[0].mxu0 %v583
        %v890 = vpop.f32.mrb[0].mxu0
        %v891 = vadd.f32 %v515, %v890
        %v892 = vpop.f32.mrb[0].mxu0
        %v893 = vadd.f32 %v519, %v892
        %894 = vmatprep.mubr.f32.mxu0 0.0
        %895 = vmatmul.mubr.f32.gmra.mrb[0].mxu0 %v584
        %v896 = vpop.f32.mrb[0].mxu0
        %v897 = vadd.f32 %v515, %v896
        %v898 = vpop.f32.mrb[0].mxu0
        %v899 = vadd.f32 %v519, %v898
        %900 = vmatprep.mubr.f32.mxu0 0.0
        %901 = vmatmul.mubr.f32.gmra.mrb[0].mxu0 %v585
        %v902 = vpop.f32.mrb[0].mxu0
        %v903 = vadd.f32 %v515, %v902
        %v904 = vpop.f32.mrb[0].mxu0
        %v905 = vadd.f32 %v519, %v904
        %906 = vmatprep.mubr.f32.mxu0 0.0
        %907 = vmatmul.mubr.f32.gmra.mrb[0].mxu0 %v602
        %v908 = vpop.f32.mrb[0].mxu0
        %v909 = vadd.f32 %v515, %v908
        %v910 = vpop.f32.mrb[0].mxu0
        %v911 = vadd.f32 %v519, %v910
        %912 = vmatprep.mubr.f32.mxu0 0.0
        %913 = vmatmul.mubr.f32.gmra.mrb[0].mxu0 %v603
        %v914 = vpop.f32.mrb[0].mxu0
        %v915 = vadd.f32 %v515, %v914
        %v916 = vpop.f32.mrb[0].mxu0
        %v917 = vadd.f32 %v519, %v916
        %918 = vmatprep.mubr.f32.mxu0 0.0
        %919 = vmatmul.mubr.f32.gmra.mrb[0].mxu0 %v604
        %v920 = vpop.f32.mrb[0].mxu0
        %v921 = vadd.f32 %v515, %v920
        %v922 = vpop.f32.mrb[0].mxu0
        %v923 = vadd.f32 %v519, %v922
        %924 = vmatprep.mubr.f32.mxu0 0.0
        %925 = vmatmul.mubr.f32.gmra.mrb[0].mxu0 %v605
        %v926 = vpop.f32.mrb[0].mxu0
        %v927 = vadd.f32 %v515, %v926
        %v928 = vpop.f32.mrb[0].mxu0
        %v929 = vadd.f32 %v519, %v928
        %930 = vmatprep.mubr.f32.mxu0 0.0
        %931 = vmatmul.mubr.f32.gmra.mrb[0].mxu0 %v606
        %v932 = vpop.f32.mrb[0].mxu0
        %v933 = vadd.f32 %v515, %v932
        %v934 = vpop.f32.mrb[0].mxu0
        %v935 = vadd.f32 %v519, %v934
        %936 = vmatprep.mubr.f32.mxu0 0.0
        %937 = vmatmul.mubr.f32.gmra.mrb[0].mxu0 %v607
        %v938 = vpop.f32.mrb[0].mxu0
        %v939 = vadd.f32 %v515, %v938
        %v940 = vpop.f32.mrb[0].mxu0
        %v941 = vadd.f32 %v519, %v940
        %942 = vmatprep.mubr.f32.mxu0 0.0
        %943 = vmatmul.mubr.f32.gmra.mrb[0].mxu0 %v608
        %v944 = vpop.f32.mrb[0].mxu0
        %v945 = vadd.f32 %v515, %v944
        %v946 = vpop.f32.mrb[0].mxu0
        %v947 = vadd.f32 %v519, %v946
        %948 = vmatprep.mubr.f32.mxu0 0.0
        %949 = vmatmul.mubr.f32.gmra.mrb[0].mxu0 %v609
        %v950 = vpop.f32.mrb[0].mxu0
        %v951 = vadd.f32 %v515, %v950
        %v952 = vpop.f32.mrb[0].mxu0
        %v953 = vadd.f32 %v519, %v952
        %954 = vmatprep.mubr.f32.mxu0 0.0
        %955 = vmatmul.mubr.f32.gmra.mrb[0].mxu0 %v610
        %v956 = vpop.f32.mrb[0].mxu0
        %v957 = vadd.f32 %v515, %v956
        %v958 = vpop.f32.mrb[0].mxu0
        %v959 = vadd.f32 %v519, %v958
        %960 = vmatprep.mubr.f32.mxu0 0.0
        %961 = vmatmul.mubr.f32.gmra.mrb[0].mxu0 %v611
        %v962 = vpop.f32.mrb[0].mxu0
        %v963 = vadd.f32 %v515, %v962
        %v964 = vpop.f32.mrb[0].mxu0
        %v965 = vadd.f32 %v519, %v964
        %966 = vmatprep.mubr.f32.mxu0 0.0
        %967 = vmatmul.mubr.f32.gmra.mrb[0].mxu0 %v612
        %v968 = vpop.f32.mrb[0].mxu0
        %v969 = vadd.f32 %v515, %v968
        %v970 = vpop.f32.mrb[0].mxu0
        %v971 = vadd.f32 %v519, %v970
        %972 = vmatprep.mubr.f32.mxu0 0.0
        %973 = vmatmul.mubr.f32.gmra.mrb[0].mxu0 %v613
        %v974 = vpop.f32.mrb[0].mxu0
        %v975 = vadd.f32 %v515, %v974
        %v976 = vpop.f32.mrb[0].mxu0
        %v977 = vadd.f32 %v519, %v976
        %978 = vmatprep.mubr.f32.mxu0 0.0
        %979 = vmatmul.mubr.f32.gmra.mrb[0].mxu0 %v614
        %v980 = vpop.f32.mrb[0].mxu0
        %v981 = vadd.f32 %v515, %v980
        %v982 = vpop.f32.mrb[0].mxu0
        %v983 = vadd.f32 %v519, %v982
        %984 = vmatprep.mubr.f32.mxu0 0.0
        %985 = vmatmul.mubr.f32.gmra.mrb[0].mxu0 %v615
        %v986 = vpop.f32.mrb[0].mxu0
        %v987 = vadd.f32 %v515, %v986
        %v988 = vpop.f32.mrb[0].mxu0
        %v989 = vadd.f32 %v519, %v988
        %990 = vmatprep.mubr.f32.mxu0 0.0
        %991 = vmatmul.mubr.f32.gmra.mrb[0].mxu0 %v616
        %v992 = vpop.f32.mrb[0].mxu0
        %v993 = vadd.f32 %v515, %v992
        %v994 = vpop.f32.mrb[0].mxu0
        %v995 = vadd.f32 %v519, %v994
        %996 = vmatprep.mubr.f32.mxu0 0.0
        %997 = vmatmul.mubr.f32.gmra.mrb[0].mxu0 %v617
        %v998 = vpop.f32.mrb[0].mxu0
        %v999 = vadd.f32 %v515, %v998
        %v1000 = vpop.f32.mrb[0].mxu0
        %v1001 = vadd.f32 %v519, %v1000
        %1002 = vmatprep.mubr.f32.mxu0 0.0
        %1003 = vmatmul.mubr.f32.gmra.mrb[0].mxu0 %v634
        %v1004 = vpop.f32.mrb[0].mxu0
        %v1005 = vadd.f32 %v515, %v1004
        %v1006 = vpop.f32.mrb[0].mxu0
        %v1007 = vadd.f32 %v519, %v1006
        %1008 = vmatprep.mubr.f32.mxu0 0.0
        %1009 = vmatmul.mubr.f32.gmra.mrb[0].mxu0 %v635
        %v1010 = vpop.f32.mrb[0].mxu0
        %v1011 = vadd.f32 %v515, %v1010
        %v1012 = vpop.f32.mrb[0].mxu0
        %v1013 = vadd.f32 %v519, %v1012
        %1014 = vmatprep.mubr.f32.mxu0 0.0
        %1015 = vmatmul.mubr.f32.gmra.mrb[0].mxu0 %v636
        %v1016 = vpop.f32.mrb[0].mxu0
        %v1017 = vadd.f32 %v515, %v1016
        %v1018 = vpop.f32.mrb[0].mxu0
        %v1019 = vadd.f32 %v519, %v1018
        %1020 = vmatprep.mubr.f32.mxu0 0.0
        %1021 = vmatmul.mubr.f32.gmra.mrb[0].mxu0 %v637
        %v1022 = vpop.f32.mrb[0].mxu0
        %v1023 = vadd.f32 %v515, %v1022
        %v1024 = vpop.f32.mrb[0].mxu0
        %v1025 = vadd.f32 %v519, %v1024
        %1026 = vmatprep.mubr.f32.mxu0 0.0
        %1027 = vmatmul.mubr.f32.gmra.mrb[0].mxu0 %v638
        %v1028 = vpop.f32.mrb[0].mxu0
        %v1029 = vadd.f32 %v515, %v1028
        %v1030 = vpop.f32.mrb[0].mxu0
        %v1031 = vadd.f32 %v519, %v1030
        %1032 = vmatprep.mubr.f32.mxu0 0.0
        %1033 = vmatmul.mubr.f32.gmra.mrb[0].mxu0 %v639
        %v1034 = vpop.f32.mrb[0].mxu0
        %v1035 = vadd.f32 %v515, %v1034
        %v1036 = vpop.f32.mrb[0].mxu0
        %v1037 = vadd.f32 %v519, %v1036
        %1038 = vmatprep.mubr.f32.mxu0 0.0
        %1039 = vmatmul.mubr.f32.gmra.mrb[0].mxu0 %v640
        %v1040 = vpop.f32.mrb[0].mxu0
        %v1041 = vadd.f32 %v515, %v1040
        %v1042 = vpop.f32.mrb[0].mxu0
        %v1043 = vadd.f32 %v519, %v1042
        %1044 = vmatprep.mubr.f32.mxu0 0.0
        %1045 = vmatmul.mubr.f32.gmra.mrb[0].mxu0 %v641
        %v1046 = vpop.f32.mrb[0].mxu0
        %v1047 = vadd.f32 %v515, %v1046
        %v1048 = vpop.f32.mrb[0].mxu0
        %v1049 = vadd.f32 %v519, %v1048
        %1050 = vmatprep.mubr.f32.mxu0 0.0
        %1051 = vmatmul.mubr.f32.gmra.mrb[0].mxu0 %v642
        %v1052 = vpop.f32.mrb[0].mxu0
        %v1053 = vadd.f32 %v515, %v1052
        %v1054 = vpop.f32.mrb[0].mxu0
        %v1055 = vadd.f32 %v519, %v1054
        %1056 = vmatprep.mubr.f32.mxu0 0.0
        %1057 = vmatmul.mubr.f32.gmra.mrb[0].mxu0 %v643
        %v1058 = vpop.f32.mrb[0].mxu0
        %v1059 = vadd.f32 %v515, %v1058
        %v1060 = vpop.f32.mrb[0].mxu0
        %v1061 = vadd.f32 %v519, %v1060
        %1062 = vmatprep.mubr.f32.mxu0 0.0
        %1063 = vmatmul.mubr.f32.gmra.mrb[0].mxu0 %v644
        %v1064 = vpop.f32.mrb[0].mxu0
        %v1065 = vadd.f32 %v515, %v1064
        %v1066 = vpop.f32.mrb[0].mxu0
        %v1067 = vadd.f32 %v519, %v1066
        %1068 = vmatprep.mubr.f32.mxu0 0.0
        %1069 = vmatmul.mubr.f32.gmra.mrb[0].mxu0 %v645
        %v1070 = vpop.f32.mrb[0].mxu0
        %v1071 = vadd.f32 %v515, %v1070
        %v1072 = vpop.f32.mrb[0].mxu0
        %v1073 = vadd.f32 %v519, %v1072
        %1074 = vmatprep.mubr.f32.mxu0 0.0
        %1075 = vmatmul.mubr.f32.gmra.mrb[0].mxu0 %v646
        %v1076 = vpop.f32.mrb[0].mxu0
        %v1077 = vadd.f32 %v515, %v1076
        %v1078 = vpop.f32.mrb[0].mxu0
        %v1079 = vadd.f32 %v519, %v1078
        %1080 = vmatprep.mubr.f32.mxu0 0.0
        %1081 = vmatmul.mubr.f32.gmra.mrb[0].mxu0 %v647
        %v1082 = vpop.f32.mrb[0].mxu0
        %v1083 = vadd.f32 %v515, %v1082
        %v1084 = vpop.f32.mrb[0].mxu0
        %v1085 = vadd.f32 %v519, %v1084
        %1086 = vmatprep.mubr.f32.mxu0 0.0
        %1087 = vmatmul.mubr.f32.gmra.mrb[0].mxu0 %v648
        %v1088 = vpop.f32.mrb[0].mxu0
        %v1089 = vadd.f32 %v515, %v1088
        %v1090 = vpop.f32.mrb[0].mxu0
        %v1091 = vadd.f32 %v519, %v1090
        %1092 = vmatprep.mubr.f32.mxu0 0.0
        %1093 = vmatmul.mubr.f32.gmra.mrb[0].mxu0 %v649
        %v1094 = vpop.f32.mrb[0].mxu0
        %v1095 = vadd.f32 %v515, %v1094
        %v1096 = vpop.f32.mrb[0].mxu0
        %v1097 = vadd.f32 %v519, %v1096
        %1098 = vdwg.mxu0
        %1099 = vst [vmem:[%s407] sm:$0xff] %v717
        %1100 = vst [vmem:[%s407 + $0x8] sm:$0xff] %v719
        %1101 = vst [vmem:[%s407 + $0x10] sm:$0xff] %v723
        %1102 = vst [vmem:[%s407 + $0x18] sm:$0xff] %v725
        %1103 = vst [vmem:[%s407 + $0x20] sm:$0xff] %v729
        %1104 = vst [vmem:[%s407 + $0x28] sm:$0xff] %v731
        %1105 = vst [vmem:[%s407 + $0x30] sm:$0xff] %v735
        %1106 = vst [vmem:[%s407 + $0x38] sm:$0xff] %v737
        %1107 = vst [vmem:[%s407 + $0x40] sm:$0xff] %v741
        %1108 = vst [vmem:[%s407 + $0x48] sm:$0xff] %v743
        %1109 = vst [vmem:[%s407 + $0x50] sm:$0xff] %v747
        %1110 = vst [vmem:[%s407 + $0x58] sm:$0xff] %v749
        %1111 = vst [vmem:[%s407 + $0x60] sm:$0xff] %v753
        %1112 = vst [vmem:[%s407 + $0x68] sm:$0xff] %v755
        %1113 = vst [vmem:[%s407 + $0x70] sm:$0xff] %v759
        %1114 = vst [vmem:[%s407 + $0x78] sm:$0xff] %v761
        %1115 = vst [vmem:[%s407 + $0x80] sm:$0xff] %v765
        %1116 = vst [vmem:[%s407 + $0x88] sm:$0xff] %v767
        %1117 = vst [vmem:[%s407 + $0x90] sm:$0xff] %v771
        %1118 = vst [vmem:[%s407 + $0x98] sm:$0xff] %v773
        %1119 = vst [vmem:[%s407 + $0xa0] sm:$0xff] %v777
        %1120 = vst [vmem:[%s407 + $0xa8] sm:$0xff] %v779
        %1121 = vst [vmem:[%s407 + $0xb0] sm:$0xff] %v783
        %1122 = vst [vmem:[%s407 + $0xb8] sm:$0xff] %v785
        %1123 = vst [vmem:[%s407 + $0xc0] sm:$0xff] %v789
        %1124 = vst [vmem:[%s407 + $0xc8] sm:$0xff] %v791
        %1125 = vst [vmem:[%s407 + $0xd0] sm:$0xff] %v795
        %1126 = vst [vmem:[%s407 + $0xd8] sm:$0xff] %v797
        %1127 = vst [vmem:[%s407 + $0xe0] sm:$0xff] %v801
        %1128 = vst [vmem:[%s407 + $0xe8] sm:$0xff] %v803
        %1129 = vst [vmem:[%s407 + $0xf0] sm:$0xff] %v807
        %1130 = vst [vmem:[%s407 + $0xf8] sm:$0xff] %v809
        %1131 = vst [vmem:[%s407 + $0x100] sm:$0xff] %v813
        %1132 = vst [vmem:[%s407 + $0x108] sm:$0xff] %v815
        %1133 = vst [vmem:[%s407 + $0x110] sm:$0xff] %v819
        %1134 = vst [vmem:[%s407 + $0x118] sm:$0xff] %v821
        %1135 = vst [vmem:[%s407 + $0x120] sm:$0xff] %v825
        %1136 = vst [vmem:[%s407 + $0x128] sm:$0xff] %v827
        %1137 = vst [vmem:[%s407 + $0x130] sm:$0xff] %v831
        %1138 = vst [vmem:[%s407 + $0x138] sm:$0xff] %v833
        %1139 = vst [vmem:[%s407 + $0x140] sm:$0xff] %v837
        %1140 = vst [vmem:[%s407 + $0x148] sm:$0xff] %v839
        %1141 = vst [vmem:[%s407 + $0x150] sm:$0xff] %v843
        %1142 = vst [vmem:[%s407 + $0x158] sm:$0xff] %v845
        %1143 = vst [vmem:[%s407 + $0x160] sm:$0xff] %v849
        %1144 = vst [vmem:[%s407 + $0x168] sm:$0xff] %v851
        %1145 = vst [vmem:[%s407 + $0x170] sm:$0xff] %v855
        %1146 = vst [vmem:[%s407 + $0x178] sm:$0xff] %v857
        %1147 = vst [vmem:[%s407 + $0x180] sm:$0xff] %v861
        %1148 = vst [vmem:[%s407 + $0x188] sm:$0xff] %v863
        %1149 = vst [vmem:[%s407 + $0x190] sm:$0xff] %v867
        %1150 = vst [vmem:[%s407 + $0x198] sm:$0xff] %v869
        %1151 = vst [vmem:[%s407 + $0x1a0] sm:$0xff] %v873
        %1152 = vst [vmem:[%s407 + $0x1a8] sm:$0xff] %v875
        %1153 = vst [vmem:[%s407 + $0x1b0] sm:$0xff] %v879
        %1154 = vst [vmem:[%s407 + $0x1b8] sm:$0xff] %v881
        %1155 = vst [vmem:[%s407 + $0x1c0] sm:$0xff] %v885
        %1156 = vst [vmem:[%s407 + $0x1c8] sm:$0xff] %v887
        %1157 = vst [vmem:[%s407 + $0x1d0] sm:$0xff] %v891
        %1158 = vst [vmem:[%s407 + $0x1d8] sm:$0xff] %v893
        %1159 = vst [vmem:[%s407 + $0x1e0] sm:$0xff] %v897
        %1160 = vst [vmem:[%s407 + $0x1e8] sm:$0xff] %v899
        %1161 = vst [vmem:[%s407 + $0x1f0] sm:$0xff] %v903
        %1162 = vst [vmem:[%s407 + $0x1f8] sm:$0xff] %v905
        %1163 = vst [vmem:[%s407 + $0x200] sm:$0xff] %v909
        %1164 = vst [vmem:[%s407 + $0x208] sm:$0xff] %v911
        %1165 = vst [vmem:[%s407 + $0x210] sm:$0xff] %v915
        %1166 = vst [vmem:[%s407 + $0x218] sm:$0xff] %v917
        %1167 = vst [vmem:[%s407 + $0x220] sm:$0xff] %v921
        %1168 = vst [vmem:[%s407 + $0x228] sm:$0xff] %v923
        %1169 = vst [vmem:[%s407 + $0x230] sm:$0xff] %v927
        %1170 = vst [vmem:[%s407 + $0x238] sm:$0xff] %v929
        %1171 = vst [vmem:[%s407 + $0x240] sm:$0xff] %v933
        %1172 = vst [vmem:[%s407 + $0x248] sm:$0xff] %v935
        %1173 = vst [vmem:[%s407 + $0x250] sm:$0xff] %v939
        %1174 = vst [vmem:[%s407 + $0x258] sm:$0xff] %v941
        %1175 = vst [vmem:[%s407 + $0x260] sm:$0xff] %v945
        %1176 = vst [vmem:[%s407 + $0x268] sm:$0xff] %v947
        %1177 = vst [vmem:[%s407 + $0x270] sm:$0xff] %v951
        %1178 = vst [vmem:[%s407 + $0x278] sm:$0xff] %v953
        %1179 = vst [vmem:[%s407 + $0x280] sm:$0xff] %v957
        %1180 = vst [vmem:[%s407 + $0x288] sm:$0xff] %v959
        %1181 = vst [vmem:[%s407 + $0x290] sm:$0xff] %v963
        %1182 = vst [vmem:[%s407 + $0x298] sm:$0xff] %v965
        %1183 = vst [vmem:[%s407 + $0x2a0] sm:$0xff] %v969
        %1184 = vst [vmem:[%s407 + $0x2a8] sm:$0xff] %v971
        %1185 = vst [vmem:[%s407 + $0x2b0] sm:$0xff] %v975
        %1186 = vst [vmem:[%s407 + $0x2b8] sm:$0xff] %v977
        %1187 = vst [vmem:[%s407 + $0x2c0] sm:$0xff] %v981
        %1188 = vst [vmem:[%s407 + $0x2c8] sm:$0xff] %v983
        %1189 = vst [vmem:[%s407 + $0x2d0] sm:$0xff] %v987
        %1190 = vst [vmem:[%s407 + $0x2d8] sm:$0xff] %v989
        %1191 = vst [vmem:[%s407 + $0x2e0] sm:$0xff] %v993
        %1192 = vst [vmem:[%s407 + $0x2e8] sm:$0xff] %v995
        %1193 = vst [vmem:[%s407 + $0x2f0] sm:$0xff] %v999
        %1194 = vst [vmem:[%s407 + $0x2f8] sm:$0xff] %v1001
        %1195 = vst [vmem:[%s407 + $0x300] sm:$0xff] %v1005
        %1196 = vst [vmem:[%s407 + $0x308] sm:$0xff] %v1007
        %1197 = vst [vmem:[%s407 + $0x310] sm:$0xff] %v1011
        %1198 = vst [vmem:[%s407 + $0x318] sm:$0xff] %v1013
        %1199 = vst [vmem:[%s407 + $0x320] sm:$0xff] %v1017
        %1200 = vst [vmem:[%s407 + $0x328] sm:$0xff] %v1019
        %1201 = vst [vmem:[%s407 + $0x330] sm:$0xff] %v1023
        %1202 = vst [vmem:[%s407 + $0x338] sm:$0xff] %v1025
        %1203 = vst [vmem:[%s407 + $0x340] sm:$0xff] %v1029
        %1204 = vst [vmem:[%s407 + $0x348] sm:$0xff] %v1031
        %1205 = vst [vmem:[%s407 + $0x350] sm:$0xff] %v1035
        %1206 = vst [vmem:[%s407 + $0x358] sm:$0xff] %v1037
        %1207 = vst [vmem:[%s407 + $0x360] sm:$0xff] %v1041
        %1208 = vst [vmem:[%s407 + $0x368] sm:$0xff] %v1043
        %1209 = vst [vmem:[%s407 + $0x370] sm:$0xff] %v1047
        %1210 = vst [vmem:[%s407 + $0x378] sm:$0xff] %v1049
        %1211 = vst [vmem:[%s407 + $0x380] sm:$0xff] %v1053
        %1212 = vst [vmem:[%s407 + $0x388] sm:$0xff] %v1055
        %1213 = vst [vmem:[%s407 + $0x390] sm:$0xff] %v1059
        %1214 = vst [vmem:[%s407 + $0x398] sm:$0xff] %v1061
        %1215 = vst [vmem:[%s407 + $0x3a0] sm:$0xff] %v1065
        %1216 = vst [vmem:[%s407 + $0x3a8] sm:$0xff] %v1067
        %1217 = vst [vmem:[%s407 + $0x3b0] sm:$0xff] %v1071
        %1218 = vst [vmem:[%s407 + $0x3b8] sm:$0xff] %v1073
        %1219 = vst [vmem:[%s407 + $0x3c0] sm:$0xff] %v1077
        %1220 = vst [vmem:[%s407 + $0x3c8] sm:$0xff] %v1079
        %1221 = vst [vmem:[%s407 + $0x3d0] sm:$0xff] %v1083
        %1222 = vst [vmem:[%s407 + $0x3d8] sm:$0xff] %v1085
        %1223 = vst [vmem:[%s407 + $0x3e0] sm:$0xff] %v1089
        %1224 = vst [vmem:[%s407 + $0x3e8] sm:$0xff] %v1091
        %1225 = vst [vmem:[%s407 + $0x3f0] sm:$0xff] %v1095
        %1226 = vst [vmem:[%s407 + $0x3f8] sm:$0xff] %v1097
        %p1227 = scmp.eq.s32.totalorder %s22, 0
        // Predicated region
        $region60: #{embedding_layer_forward.1} parent=54 // pred_check
          %p1228 = pneg %p1227
        $region61: #{embedding_layer_forward.1} parent=54 // pred_check_branch
          %1230 = sbr.rel (%p1228) target = $region63
        $region62: #{embedding_layer_forward.1} parent=54 // pred_region
          %v1231 = vld [vmem:[%s1] sm:$0xff]
          %v1232 = vld [vmem:[%s2] sm:$0xff]
          %v1233 = vld [vmem:[%s2 + $0x8] sm:$0xff]
          %v1234 = vld [vmem:[%s2 + $0x10] sm:$0xff]
          %v1235 = vld [vmem:[%s2 + $0x18] sm:$0xff]
          %v1236 = vld [vmem:[%s2 + $0x20] sm:$0xff]
          %v1237 = vld [vmem:[%s2 + $0x28] sm:$0xff]
          %v1238 = vld [vmem:[%s2 + $0x30] sm:$0xff]
          %v1239 = vld [vmem:[%s2 + $0x38] sm:$0xff]
          %v1240 = vld [vmem:[%s2 + $0x40] sm:$0xff]
          %v1241 = vld [vmem:[%s2 + $0x48] sm:$0xff]
          %v1242 = vld [vmem:[%s2 + $0x50] sm:$0xff]
          %v1243 = vld [vmem:[%s2 + $0x58] sm:$0xff]
          %v1244 = vld [vmem:[%s2 + $0x60] sm:$0xff]
          %v1245 = vld [vmem:[%s2 + $0x68] sm:$0xff]
          %v1246 = vld [vmem:[%s2 + $0x70] sm:$0xff]
          %v1247 = vld [vmem:[%s2 + $0x78] sm:$0xff]
          %v1248 = vld [vmem:[%s2 + $0x80] sm:$0xff]
          %v1249 = vld [vmem:[%s2 + $0x88] sm:$0xff]
          %v1250 = vld [vmem:[%s2 + $0x90] sm:$0xff]
          %v1251 = vld [vmem:[%s2 + $0x98] sm:$0xff]
          %v1252 = vld [vmem:[%s2 + $0xa0] sm:$0xff]
          %v1253 = vld [vmem:[%s2 + $0xa8] sm:$0xff]
          %v1254 = vld [vmem:[%s2 + $0xb0] sm:$0xff]
          %v1255 = vld [vmem:[%s2 + $0xb8] sm:$0xff]
          %v1256 = vld [vmem:[%s2 + $0xc0] sm:$0xff]
          %v1257 = vld [vmem:[%s2 + $0xc8] sm:$0xff]
          %v1258 = vld [vmem:[%s2 + $0xd0] sm:$0xff]
          %v1259 = vld [vmem:[%s2 + $0xd8] sm:$0xff]
          %v1260 = vld [vmem:[%s2 + $0xe0] sm:$0xff]
          %v1261 = vld [vmem:[%s2 + $0xe8] sm:$0xff]
          %v1262 = vld [vmem:[%s2 + $0xf0] sm:$0xff]
          %v1263 = vld [vmem:[%s2 + $0xf8] sm:$0xff]
          %v1264 = vld [vmem:[%s3] sm:$0x3]
          %v1266 = vlaneseq
          %v1267 = vshrl.u32 %v1266, 7
          %v1268 = vsub.s32 0, %v1267
          %v1269 = vrot.slane %v1264, %v1268
          %v1270 = vlaneseq
          %v1271 = vshrl.u32 %v1270, 7
          %v1272 = vsub.s32 1, %v1271
          %v1273 = vrot.slane %v1264, %v1272
          %1276 = vmatprep.subr.mxu0 %v1233
          %1277 = vmatpush1.msra.mxu0 %v1232
          %1278 = vmatprep.subr.mxu0 %v1235
          %1279 = vmatpush1.msra.mxu0 %v1234
          %1280 = vmatprep.subr.mxu0 %v1237
          %1281 = vmatpush1.msra.mxu0 %v1236
          %1282 = vmatprep.subr.mxu0 %v1239
          %1283 = vmatpush1.msra.mxu0 %v1238
          %1284 = vmatprep.subr.mxu0 %v1241
          %1285 = vmatpush1.msra.mxu0 %v1240
          %1286 = vmatprep.subr.mxu0 %v1243
          %1287 = vmatpush1.msra.mxu0 %v1242
          %1288 = vmatprep.subr.mxu0 %v1245
          %1289 = vmatpush1.msra.mxu0 %v1244
          %1290 = vmatprep.subr.mxu0 %v1247
          %1291 = vmatpush1.msra.mxu0 %v1246
          %1292 = vmatprep.subr.mxu0 %v1249
          %1293 = vmatpush1.msra.mxu0 %v1248
          %1294 = vmatprep.subr.mxu0 %v1251
          %1295 = vmatpush1.msra.mxu0 %v1250
          %1296 = vmatprep.subr.mxu0 %v1253
          %1297 = vmatpush1.msra.mxu0 %v1252
          %1298 = vmatprep.subr.mxu0 %v1255
          %1299 = vmatpush1.msra.mxu0 %v1254
          %1300 = vmatprep.subr.mxu0 %v1257
          %1301 = vmatpush1.msra.mxu0 %v1256
          %1302 = vmatprep.subr.mxu0 %v1259
          %1303 = vmatpush1.msra.mxu0 %v1258
          %1304 = vmatprep.subr.mxu0 %v1261
          %1305 = vmatpush1.msra.mxu0 %v1260
          %1306 = vmatprep.subr.mxu0 %v1263
          %1307 = vmatpush1.msra.mxu0 %v1262
          %1308 = vmatprep.subr.mxu0 0.0
          %1309 = vmatpush1.msra.mxu0 0.0
          %1310 = vmatprep.subr.mxu0 0.0
          %1311 = vmatpush1.msra.mxu0 0.0
          %1312 = vmatprep.subr.mxu0 0.0
          %1313 = vmatpush1.msra.mxu0 0.0
          %1314 = vmatprep.subr.mxu0 0.0
          %1315 = vmatpush1.msra.mxu0 0.0
          %1316 = vmatprep.subr.mxu0 0.0
          %1317 = vmatpush1.msra.mxu0 0.0
          %1318 = vmatprep.subr.mxu0 0.0
          %1319 = vmatpush1.msra.mxu0 0.0
          %1320 = vmatprep.subr.mxu0 0.0
          %1321 = vmatpush1.msra.mxu0 0.0
          %1322 = vmatprep.subr.mxu0 0.0
          %1323 = vmatpush1.msra.mxu0 0.0
          %1324 = vmatprep.subr.mxu0 0.0
          %1325 = vmatpush1.msra.mxu0 0.0
          %1326 = vmatprep.subr.mxu0 0.0
          %1327 = vmatpush1.msra.mxu0 0.0
          %1328 = vmatprep.subr.mxu0 0.0
          %1329 = vmatpush1.msra.mxu0 0.0
          %1330 = vmatprep.subr.mxu0 0.0
          %1331 = vmatpush1.msra.mxu0 0.0
          %1332 = vmatprep.subr.mxu0 0.0
          %1333 = vmatpush1.msra.mxu0 0.0
          %1334 = vmatprep.subr.mxu0 0.0
          %1335 = vmatpush1.msra.mxu0 0.0
          %1336 = vmatprep.subr.mxu0 0.0
          %1337 = vmatpush1.msra.mxu0 0.0
          %1338 = vmatprep.subr.mxu0 0.0
          %1339 = vmatpush1.msra.mxu0 0.0
          %1340 = vmatprep.mubr.f32.mxu0 0.0
          %1341 = vmatmul.mubr.f32.gmra.mrb[0].mxu0 %v1231
          %v1342 = vpop.f32.mrb[0].mxu0
          %v1343 = vadd.f32 %v1269, %v1342
          %v1344 = vpop.f32.mrb[0].mxu0
          %v1345 = vadd.f32 %v1273, %v1344
          %1346 = vdwg.mxu0
          %1347 = vst [vmem:[%s413] sm:$0xff] %v1343
          %1348 = vst [vmem:[%s413 + $0x8] sm:$0xff] %v1345
        $region63: #{embedding_layer_forward.1} parent=54 // pred_fallthru
          _
        %s1349 = smul.u32 64, %s22
        %p1350 = scmp.lt.s32.totalorder %s21, 1
        %s1351 = scalar_select %p1350, %s21, 1
        %p1352 = scmp.lt.s32.totalorder %s1349, 127
        %s1353 = scalar_select %p1352, %s1349, 127
        %s1354 = smul.addr %s1353, 2
        %s1355 = smul.addr %s1351, 256
        %s1356 = sadd.s32 %s1354, %s1355
        %s1357 = smul.addr %s1356, 8
        %s1358 = scalar_lea.vmem %s4, %s1357
        %p1359 = scmp.lt.s32.totalorder %s21, 1
        %s1360 = scalar_select %p1359, %s21, 1
        %s1361 = smul.addr %s1360, 2
        %s1362 = smul.addr %s1361, 8
        %s1363 = scalar_lea.vmem %s5, %s1362
        // Predicated region
        $region64: #{embedding_layer_forward.1} parent=54 // pred_check
          %p1364 = pneg %p140
        $region65: #{embedding_layer_forward.1} parent=54 // pred_check_branch
          %1366 = sbr.rel (%p1364) target = $region67
        $region66: #{embedding_layer_forward.1} parent=54 // pred_region
          %s1367 = smul.u32 64, %s22
        $region67: #{embedding_layer_forward.1} parent=54 // pred_fallthru
          _
        // Predicated region
        $region68: #{embedding_layer_forward.1} parent=54 // pred_check
          %p1368 = pneg %p166
        $region69: #{embedding_layer_forward.1} parent=54 // pred_check_branch
          %1370 = sbr.rel (%p1368) target = $region71
        $region70: #{embedding_layer_forward.1} parent=54 // pred_region
          _
        $region71: #{embedding_layer_forward.1} parent=54 // pred_fallthru
          _
      $region55: #{embedding_layer_forward.1} parent=5 // pred_fallthru
        _
      %p1371 = scmp.le.s32.totalorder 2, %s12
      // Predicated region
      $region72: #{embedding_layer_forward.1} parent=5 // pred_check
        %p1372 = pneg %p1371
      $region73: #{embedding_layer_forward.1} parent=5 // pred_check_branch
        %1374 = sbr.rel (%p1372) target = $region75
      $region74: #{embedding_layer_forward.1} parent=5 // pred_region
        %s1375 = ssub.s32 %s12, 2
        // Predicated region
        $region76: #{embedding_layer_forward.1} parent=74 // pred_check
          %p1376 = pneg %p146
        $region77: #{embedding_layer_forward.1} parent=74 // pred_check_branch
          %1378 = sbr.rel (%p1376) target = $region79
        $region78: #{embedding_layer_forward.1} parent=74 // pred_region
          %s1379 = smul.u32 64, %s24
          %p1380 = scmp.lt.s32.totalorder %s23, 1
          %s1381 = scalar_select %p1380, %s23, 1
          %p1382 = scmp.lt.s32.totalorder %s1379, 127
          %s1383 = scalar_select %p1382, %s1379, 127
          %s1384 = smul.addr %s1383, 2
          %s1385 = smul.addr %s1381, 256
          %s1386 = sadd.s32 %s1384, %s1385
          %s1387 = smul.addr %s1386, 8
          %s1388 = scalar_lea.vmem %s4, %s1387
        $region79: #{embedding_layer_forward.1} parent=74 // pred_fallthru
          _
        // Predicated region
        $region80: #{embedding_layer_forward.1} parent=74 // pred_check
          %p1389 = pneg %p172
        $region81: #{embedding_layer_forward.1} parent=74 // pred_check_branch
          %1391 = sbr.rel (%p1389) target = $region83
        $region82: #{embedding_layer_forward.1} parent=74 // pred_region
          %p1392 = scmp.lt.s32.totalorder %s23, 1
          %s1393 = scalar_select %p1392, %s23, 1
          %s1394 = smul.addr %s1393, 2
          %s1395 = smul.addr %s1394, 8
          %s1396 = scalar_lea.vmem %s5, %s1395
        $region83: #{embedding_layer_forward.1} parent=74 // pred_fallthru
          _
      $region75: #{embedding_layer_forward.1} parent=5 // pred_fallthru
        _
    $region6: #{embedding_layer_forward.1} parent=1 // loop_footer
      %s16 = sadd.s32 1, %s12
    $region7: #{embedding_layer_forward.1} parent=1 // loop_footer_branch
      %11 = sbr.rel target = $region3
    $region8: #{embedding_layer_forward.1} parent=1 // loop_exit
      _

</llo_original>
